<compile_context>
chip_gen: v5e
topology: v5e:2x2
jax: 0.10.0
libtpu: 0.0.40
codegen_flags: <defaults>
</compile_context>

<pallas_src>
import jax
import jax.numpy as jnp
from jax import lax
from jax.experimental import pallas as pl
from jax.experimental.pallas import tpu as pltpu

# ----- module hyper-parameters (from CLIPureModel.__init__ defaults) -----
EMBED_DIM = 32                 # small stand-in for CLIP's 512-dim embedding
NUM_CLASSES = 8
PURIFICATION_STEPS = 10
PURIFICATION_STEP_SIZE = 30.0
PURIFICATION_GAMMA = 0.9       # momentum factor
LOGIT_SCALE_INIT = float(jnp.log(1.0 / 0.07))   # CLIP's logit_scale parameter
EPS = 1e-12                    # guard for zero norms (padded rows / grad parallel to t)


def _round_up(n, m):
    return ((n + m - 1) // m) * m


# ----------------------------- fused kernel -----------------------------------
def clipure_kernel(x_ref, w_ref, t_ref, cls_ref, scale_ref, out_ref, acc_ref):
    """embed_image (K-tiled matmul) -> purify_zi (CLIPure-Cos, L2) -> compute_logits.

    grid = (B_tiles, K_tiles); K is the reduction ("arbitrary") axis.

    x_ref:     (TB, TK)  flattened image tile (bf16, zero-padded)
    w_ref:     (TK, Dp)  synthetic image-encoder weight tile (bf16, zero-padded)
    t_ref:     (1,  Dp)  unit-norm blank-template text embedding (f32, zero-padded)
    cls_ref:   (Dp, Cp)  unit-norm class embeddings as columns (f32, zero-padded)
    scale_ref: (1,)      SMEM scalar = exp(logit_scale)
    out_ref:   (TB, Cp)  logits
    acc_ref:   (TB, Dp)  f32 accumulator scratch (persists across the K axis)
    """
    k = pl.program_id(1)

    @pl.when(k == 0)
    def _():
        acc_ref[...] = jnp.zeros_like(acc_ref)

    # ---- embed_image: weight-streaming partial matmul (bf16 in, f32 accumulate) ----
    acc_ref[...] += jnp.dot(x_ref[...], w_ref[...], preferred_element_type=jnp.float32)

    # ---- purification + logits only once the full embedding has been accumulated ----
    @pl.when(k == pl.num_programs(1) - 1)
    def _():
        emb = acc_ref[...]
        # F.normalize(image_features, dim=-1).  purify_zi's r = ||img_emb|| is then 1
        # (to f32 eps), so the redundant re-normalization / r-carry is dropped.
        u0 = emb * lax.rsqrt(jnp.sum(emb * emb, axis=1, keepdims=True) + EPS)

        # hoist the blank-template broadcast out of the loop (JAX does not CSE broadcasts)
        t_b = jnp.broadcast_to(t_ref[...], u0.shape)

        gamma = PURIFICATION_GAMMA
        step = PURIFICATION_STEP_SIZE

        def body(_, carry):
            u, mom = carry
            cos = jnp.sum(u * t_b, axis=1, keepdims=True)   # F.cosine_similarity(u, t)
            # grad_u = -(1/B)*(t - cos*u); with ||u|| = ||t|| = 1,
            # ||t - cos*u||^2 = 1 - cos^2, so the L2-normalized gradient direction is
            # -(t - cos*u) * rsqrt(1 - cos^2) and the 1/B factor cancels.
            # Clamp 1 - cos^2 at 0 (f32 rounding can push |cos| marginally above 1).
            inv_gnorm = lax.rsqrt(jnp.maximum(1.0 - cos * cos, 0.0) + EPS)
            grad_dir = -(t_b - cos * u) * inv_gnorm
            mom = gamma * mom - (1.0 - gamma) * grad_dir
            u_new = u + step * mom
            u_new = u_new * lax.rsqrt(jnp.sum(u_new * u_new, axis=1, keepdims=True) + EPS)
            return u_new, mom

        u_final, _ = lax.fori_loop(0, PURIFICATION_STEPS, body,
                                   (u0, jnp.zeros_like(u0)), unroll=True)

        # ---- compute_logits: img_emb @ class_embeddings, scaled by exp(logit_scale) ----
        logits = jnp.dot(u_final, cls_ref[...], preferred_element_type=jnp.float32)
        out_ref[...] = logits * scale_ref[0]


# --------------------- one-time parameter preparation --------------------------
def prepare_clipure_params(w_img, blank_emb, class_emb,
                           logit_scale=LOGIT_SCALE_INIT, tk_max=4096):
    """Pad + cast the model parameters ONCE (hoisted out of the per-call path).

    tk_max: K-tile size cap (multiple of 128).  4096 keeps the double-buffered bf16
    working set ~14 MiB for D=512 / TB=256 — safe on v7x's 64 MiB VMEM and well under
    v5e/v6e budgets; larger values help v6e slightly by amortizing per-grid-step overhead.
    """
    F_, D = w_img.shape
    C = class_emb.shape[1]

    tk = min(_round_up(tk_max, 128), _round_up(F_, 128))
    Fp = _round_up(F_, tk)                  # feature axis padded to a multiple of TK
    Dp = _round_up(D, 128)
    Cp = _round_up(C, 128)

    # bf16 weights halve the HBM traffic of the (memory-bound) weight-streaming matmul.
    w_p = jnp.pad(w_img.astype(jnp.float32),
                  ((0, Fp - F_), (0, Dp - D))).astype(jnp.bfloat16)
    t_p = jnp.pad(blank_emb.astype(jnp.float32), ((0, 0), (0, Dp - D)))
    cls_p = jnp.pad(class_emb.astype(jnp.float32), ((0, Dp - D), (0, Cp - C)))
    scale = jnp.exp(jnp.asarray(logit_scale, jnp.float32)).reshape(1)

    return dict(w=w_p, t=t_p, cls=cls_p, scale=scale,
                F=F_, Fp=Fp, D=D, Dp=Dp, C=C, Cp=Cp, tk=tk)


# ----------------------------- forward wrapper ---------------------------------
def clipure_forward(images, params, tb_max=256):
    """images: (B, C, H, W) NCHW -> (B, NUM_CLASSES) logits."""
    B = images.shape[0]
    x = images.reshape(B, -1).astype(jnp.float32)
    F_ = x.shape[1]
    assert F_ == params["F"], "image feature size does not match prepared weights"

    Fp, Dp, Cp, tk, C = params["Fp"], params["Dp"], params["Cp"], params["tk"], params["C"]

    # batch tiling: sublane-aligned tiles, up to tb_max rows per tile.
    Bp = _round_up(max(B, 8), 8)
    tb = min(_round_up(tb_max, 8), Bp)
    Bp = _round_up(Bp, tb)

    x_p = jnp.pad(x, ((0, Bp - B), (0, Fp - F_))).astype(jnp.bfloat16)

    num_b = Bp // tb
    num_k = Fp // tk

    # Only split the batch axis across TensorCores when there is more than one batch
    # tile: each batch tile re-streams the full weight matrix, so megacore-splitting a
    # single tile would only double the dominant HBM traffic.
    dims = ("parallel" if num_b > 1 else "arbitrary", "arbitrary")

    # Explicit VMEM budget: above the 16/32 MiB scoped defaults of v5e/v6e, below
    # v7x's 64 MiB physical VMEM.
    vmem_limit = 48 * 1024 * 1024

    logits_p = pl.pallas_call(
        clipure_kernel,
        out_shape=jax.ShapeDtypeStruct((Bp, Cp), jnp.float32),
        grid=(num_b, num_k),
        in_specs=[
            pl.BlockSpec((tb, tk), lambda i, k: (i, k)),     # image features tile
            pl.BlockSpec((tk, Dp), lambda i, k: (k, 0)),     # encoder weight tile (streamed)
            pl.BlockSpec((1, Dp), lambda i, k: (0, 0)),      # blank-template embedding
            pl.BlockSpec((Dp, Cp), lambda i, k: (0, 0)),     # class embeddings
            pl.BlockSpec(memory_space=pltpu.SMEM),           # exp(logit_scale) scalar
        ],
        out_specs=pl.BlockSpec((tb, Cp), lambda i, k: (i, 0)),
        scratch_shapes=[pltpu.VMEM((tb, Dp), jnp.float32)],  # f32 embedding accumulator
        compiler_params=pltpu.CompilerParams(
            dimension_semantics=dims,
            vmem_limit_bytes=vmem_limit),
    )(x_p, params["w"], params["t"], params["cls"], params["scale"])

    return logits_p[:B, :C]


# ------------------------------- main --------------------------------------
if __name__ == "__main__":
    key = jax.random.PRNGKey(0)
    k_img, k_w, k_t, k_cls = jax.random.split(key, 4)

    B, Cin, H, W = 2, 3, 16, 16
    images = jax.random.normal(k_img, (B, Cin, H, W), jnp.float32)

    # deterministic synthetic parameters
    feat_dim = Cin * H * W
    w_img = jax.random.normal(k_w, (feat_dim, EMBED_DIM), jnp.float32) * 0.02

    blank_emb = jax.random.normal(k_t, (1, EMBED_DIM), jnp.float32)
    blank_emb = blank_emb / jnp.linalg.norm(blank_emb, axis=-1, keepdims=True)

    class_emb = jax.random.normal(k_cls, (EMBED_DIM, NUM_CLASSES), jnp.float32)
    class_emb = class_emb / jnp.linalg.norm(class_emb, axis=0, keepdims=True)

    # one-time param prep; small tk here so the toy run exercises the K-accumulation path
    # (feat_dim=768 -> 3 K steps).  Real CLIP sizes would use the default tk_max=4096.
    params = prepare_clipure_params(w_img, blank_emb, class_emb, tk_max=256)

    logits = clipure_forward(images, params)
    logits = jax.block_until_ready(logits)

    assert logits.shape == (B, NUM_CLASSES)
    assert bool(jnp.all(jnp.isfinite(logits)))
    print("KERNEL_OK")
</pallas_src>

<mosaic_0001>
module attributes {stable_mosaic.version = 11 : i64} {
  func.func @clipure_kernel(%arg0: i32, %arg1: i32, %arg2: memref<8x256xbf16, #tpu.memory_space<vmem>>, %arg3: memref<256x128xbf16, #tpu.memory_space<vmem>>, %arg4: memref<1x128xf32, #tpu.memory_space<vmem>>, %arg5: memref<128x128xf32, #tpu.memory_space<vmem>>, %arg6: memref<1xf32, #tpu.memory_space<smem>>, %arg7: memref<8x128xf32, #tpu.memory_space<vmem>>, %arg8: memref<8x128xf32, #tpu.memory_space<vmem>>) attributes {dimension_semantics = [#tpu.dimension_semantics<arbitrary>, #tpu.dimension_semantics<arbitrary>], iteration_bounds = array<i64: 1, 3>, scalar_prefetch = 0 : i64, scratch_operands = 1 : i64, tpu.core_type = #tpu.core_type<tc>, window_params = [{transform_indices = @transform_0, window_bounds = array<i64: 8, 256>}, {transform_indices = @transform_1, window_bounds = array<i64: 256, 128>}, {pipeline_mode = #tpu.pipeline_mode<synchronous>, transform_indices = @transform_2, window_bounds = array<i64: 1, 128>}, {pipeline_mode = #tpu.pipeline_mode<synchronous>, transform_indices = @transform_3, window_bounds = array<i64: 128, 128>}, {transform_indices = @transform_4, window_bounds = array<i64: 1>}, {transform_indices = @transform_5, window_bounds = array<i64: 8, 128>}]} {
    %c0_i32 = arith.constant 0 : i32
    %0 = arith.cmpi eq, %arg1, %c0_i32 : i32
    %1 = arith.extui %0 : i1 to i32
    %c0_i32_0 = arith.constant 0 : i32
    %2 = arith.cmpi ne, %1, %c0_i32_0 : i32
    scf.if %2 {
      %cst_9 = arith.constant 0.000000e+00 : f32
      %12 = vector.broadcast %cst_9 : f32 to vector<8x128xf32>
      %c0_10 = arith.constant 0 : index
      %c0_11 = arith.constant 0 : index
      %13 = vector.load %arg8[%c0_10, %c0_11] : memref<8x128xf32, #tpu.memory_space<vmem>>, vector<8x128xf32>
      tpu.vector_store %arg8[%c0_10, %c0_11], %12 {strides = array<i32>} : memref<8x128xf32, #tpu.memory_space<vmem>>, vector<8x128xf32>,
    } else {
    }
    %c0 = arith.constant 0 : index
    %c0_1 = arith.constant 0 : index
    %3 = vector.load %arg8[%c0, %c0_1] : memref<8x128xf32, #tpu.memory_space<vmem>>, vector<8x128xf32>
    %c0_2 = arith.constant 0 : index
    %c0_3 = arith.constant 0 : index
    %4 = vector.load %arg2[%c0_2, %c0_3] : memref<8x256xbf16, #tpu.memory_space<vmem>>, vector<8x256xbf16>
    %c0_4 = arith.constant 0 : index
    %c0_5 = arith.constant 0 : index
    %5 = vector.load %arg3[%c0_4, %c0_5] : memref<256x128xbf16, #tpu.memory_space<vmem>>, vector<256x128xbf16>
    %cst = arith.constant dense<0.000000e+00> : vector<8x128xf32>
    %6 = tpu.matmul %4, %5, %cst {dimension_numbers = #tpu.dot_dimension_numbers<[1], [0], [0], [1], [0, 0, 1, 1], [], []>} : vector<8x256xbf16>, vector<256x128xbf16>, vector<8x128xf32> -> vector<8x128xf32>
    %7 = arith.addf %3, %6 : vector<8x128xf32>
    %c0_6 = arith.constant 0 : index
    %c0_7 = arith.constant 0 : index
    %8 = vector.load %arg8[%c0_6, %c0_7] : memref<8x128xf32, #tpu.memory_space<vmem>>, vector<8x128xf32>
    tpu.vector_store %arg8[%c0_6, %c0_7], %7 {strides = array<i32>} : memref<8x128xf32, #tpu.memory_space<vmem>>, vector<8x128xf32>,
    %c2_i32 = arith.constant 2 : i32
    %9 = arith.cmpi eq, %arg1, %c2_i32 : i32
    %10 = arith.extui %9 : i1 to i32
    %c0_i32_8 = arith.constant 0 : i32
    %11 = arith.cmpi ne, %10, %c0_i32_8 : i32
    scf.if %11 {
      %c0_9 = arith.constant 0 : index
      %c0_10 = arith.constant 0 : index
      %12 = vector.load %arg8[%c0_9, %c0_10] : memref<8x128xf32, #tpu.memory_space<vmem>>, vector<8x128xf32>
      %13 = arith.mulf %12, %12 : vector<8x128xf32>
      %cst_11 = arith.constant dense<0.000000e+00> : vector<8xf32>
      %14 = vector.multi_reduction <add>, %13, %cst_11 [1] : vector<8x128xf32> to vector<8xf32>
      %15 = vector.shape_cast %14 : vector<8xf32> to vector<8x1xf32>
      %cst_12 = arith.constant 9.99999996E-13 : f32
      %16 = vector.broadcast %cst_12 : f32 to vector<8x1xf32>
      %17 = arith.addf %15, %16 : vector<8x1xf32>
      %18 = math.rsqrt %17 : vector<8x1xf32>
      %19 = vector.broadcast %18 : vector<8x1xf32> to vector<8x128xf32>
      %20 = arith.mulf %12, %19 : vector<8x128xf32>
      %c0_13 = arith.constant 0 : index
      %c0_14 = arith.constant 0 : index
      %21 = vector.load %arg4[%c0_13, %c0_14] : memref<1x128xf32, #tpu.memory_space<vmem>>, vector<1x128xf32>
      %22 = vector.shape_cast %21 : vector<1x128xf32> to vector<1x128xf32>
      %23 = vector.broadcast %22 : vector<1x128xf32> to vector<8x128xf32>
      %cst_15 = arith.constant 0.000000e+00 : f32
      %24 = vector.broadcast %cst_15 : f32 to vector<8x128xf32>
      %c0_i32_16 = arith.constant 0 : i32
      %25 = arith.mulf %20, %23 : vector<8x128xf32>
      %cst_17 = arith.constant dense<0.000000e+00> : vector<8xf32>
      %26 = vector.multi_reduction <add>, %25, %cst_17 [1] : vector<8x128xf32> to vector<8xf32>
      %27 = vector.shape_cast %26 : vector<8xf32> to vector<8x1xf32>
      %28 = arith.mulf %27, %27 : vector<8x1xf32>
      %cst_18 = arith.constant 1.000000e+00 : f32
      %29 = vector.broadcast %cst_18 : f32 to vector<8x1xf32>
      %30 = arith.subf %29, %28 : vector<8x1xf32>
      %cst_19 = arith.constant 0.000000e+00 : f32
      %31 = vector.broadcast %cst_19 : f32 to vector<8x1xf32>
      %32 = arith.maximumf %30, %31 : vector<8x1xf32>
      %cst_20 = arith.constant 9.99999996E-13 : f32
      %33 = vector.broadcast %cst_20 : f32 to vector<8x1xf32>
      %34 = arith.addf %32, %33 : vector<8x1xf32>
      %35 = math.rsqrt %34 : vector<8x1xf32>
      %36 = vector.broadcast %27 : vector<8x1xf32> to vector<8x128xf32>
      %37 = arith.mulf %36, %20 : vector<8x128xf32>
      %38 = arith.subf %23, %37 : vector<8x128xf32>
      %cst_21 = arith.constant 0.000000e+00 : f32
      %39 = vector.broadcast %cst_21 : f32 to vector<8x128xf32>
      %40 = arith.subf %39, %38 : vector<8x128xf32>
      %41 = vector.broadcast %35 : vector<8x1xf32> to vector<8x128xf32>
      %42 = arith.mulf %40, %41 : vector<8x128xf32>
      %cst_22 = arith.constant 0.899999976 : f32
      %43 = vector.broadcast %cst_22 : f32 to vector<8x128xf32>
      %44 = arith.mulf %43, %24 : vector<8x128xf32>
      %cst_23 = arith.constant 1.000000e-01 : f32
      %45 = vector.broadcast %cst_23 : f32 to vector<8x128xf32>
      %46 = arith.mulf %45, %42 : vector<8x128xf32>
      %47 = arith.subf %44, %46 : vector<8x128xf32>
      %cst_24 = arith.constant 3.000000e+01 : f32
      %48 = vector.broadcast %cst_24 : f32 to vector<8x128xf32>
      %49 = arith.mulf %48, %47 : vector<8x128xf32>
      %50 = arith.addf %20, %49 : vector<8x128xf32>
      %51 = arith.mulf %50, %50 : vector<8x128xf32>
      %cst_25 = arith.constant dense<0.000000e+00> : vector<8xf32>
      %52 = vector.multi_reduction <add>, %51, %cst_25 [1] : vector<8x128xf32> to vector<8xf32>
      %53 = vector.shape_cast %52 : vector<8xf32> to vector<8x1xf32>
      %cst_26 = arith.constant 9.99999996E-13 : f32
      %54 = vector.broadcast %cst_26 : f32 to vector<8x1xf32>
      %55 = arith.addf %53, %54 : vector<8x1xf32>
      %56 = math.rsqrt %55 : vector<8x1xf32>
      %57 = vector.broadcast %56 : vector<8x1xf32> to vector<8x128xf32>
      %58 = arith.mulf %50, %57 : vector<8x128xf32>
      %c1_i32 = arith.constant 1 : i32
      %59 = arith.mulf %58, %23 : vector<8x128xf32>
      %cst_27 = arith.constant dense<0.000000e+00> : vector<8xf32>
      %60 = vector.multi_reduction <add>, %59, %cst_27 [1] : vector<8x128xf32> to vector<8xf32>
      %61 = vector.shape_cast %60 : vector<8xf32> to vector<8x1xf32>
      %62 = arith.mulf %61, %61 : vector<8x1xf32>
      %cst_28 = arith.constant 1.000000e+00 : f32
      %63 = vector.broadcast %cst_28 : f32 to vector<8x1xf32>
      %64 = arith.subf %63, %62 : vector<8x1xf32>
      %cst_29 = arith.constant 0.000000e+00 : f32
      %65 = vector.broadcast %cst_29 : f32 to vector<8x1xf32>
      %66 = arith.maximumf %64, %65 : vector<8x1xf32>
      %cst_30 = arith.constant 9.99999996E-13 : f32
      %67 = vector.broadcast %cst_30 : f32 to vector<8x1xf32>
      %68 = arith.addf %66, %67 : vector<8x1xf32>
      %69 = math.rsqrt %68 : vector<8x1xf32>
      %70 = vector.broadcast %61 : vector<8x1xf32> to vector<8x128xf32>
      %71 = arith.mulf %70, %58 : vector<8x128xf32>
      %72 = arith.subf %23, %71 : vector<8x128xf32>
      %cst_31 = arith.constant 0.000000e+00 : f32
      %73 = vector.broadcast %cst_31 : f32 to vector<8x128xf32>
      %74 = arith.subf %73, %72 : vector<8x128xf32>
      %75 = vector.broadcast %69 : vector<8x1xf32> to vector<8x128xf32>
      %76 = arith.mulf %74, %75 : vector<8x128xf32>
      %cst_32 = arith.constant 0.899999976 : f32
      %77 = vector.broadcast %cst_32 : f32 to vector<8x128xf32>
      %78 = arith.mulf %77, %47 : vector<8x128xf32>
      %cst_33 = arith.constant 1.000000e-01 : f32
      %79 = vector.broadcast %cst_33 : f32 to vector<8x128xf32>
      %80 = arith.mulf %79, %76 : vector<8x128xf32>
      %81 = arith.subf %78, %80 : vector<8x128xf32>
      %cst_34 = arith.constant 3.000000e+01 : f32
      %82 = vector.broadcast %cst_34 : f32 to vector<8x128xf32>
      %83 = arith.mulf %82, %81 : vector<8x128xf32>
      %84 = arith.addf %58, %83 : vector<8x128xf32>
      %85 = arith.mulf %84, %84 : vector<8x128xf32>
      %cst_35 = arith.constant dense<0.000000e+00> : vector<8xf32>
      %86 = vector.multi_reduction <add>, %85, %cst_35 [1] : vector<8x128xf32> to vector<8xf32>
      %87 = vector.shape_cast %86 : vector<8xf32> to vector<8x1xf32>
      %cst_36 = arith.constant 9.99999996E-13 : f32
      %88 = vector.broadcast %cst_36 : f32 to vector<8x1xf32>
      %89 = arith.addf %87, %88 : vector<8x1xf32>
      %90 = math.rsqrt %89 : vector<8x1xf32>
      %91 = vector.broadcast %90 : vector<8x1xf32> to vector<8x128xf32>
      %92 = arith.mulf %84, %91 : vector<8x128xf32>
      %c2_i32_37 = arith.constant 2 : i32
      %93 = arith.mulf %92, %23 : vector<8x128xf32>
      %cst_38 = arith.constant dense<0.000000e+00> : vector<8xf32>
      %94 = vector.multi_reduction <add>, %93, %cst_38 [1] : vector<8x128xf32> to vector<8xf32>
      %95 = vector.shape_cast %94 : vector<8xf32> to vector<8x1xf32>
      %96 = arith.mulf %95, %95 : vector<8x1xf32>
      %cst_39 = arith.constant 1.000000e+00 : f32
      %97 = vector.broadcast %cst_39 : f32 to vector<8x1xf32>
      %98 = arith.subf %97, %96 : vector<8x1xf32>
      %cst_40 = arith.constant 0.000000e+00 : f32
      %99 = vector.broadcast %cst_40 : f32 to vector<8x1xf32>
      %100 = arith.maximumf %98, %99 : vector<8x1xf32>
      %cst_41 = arith.constant 9.99999996E-13 : f32
      %101 = vector.broadcast %cst_41 : f32 to vector<8x1xf32>
      %102 = arith.addf %100, %101 : vector<8x1xf32>
      %103 = math.rsqrt %102 : vector<8x1xf32>
      %104 = vector.broadcast %95 : vector<8x1xf32> to vector<8x128xf32>
      %105 = arith.mulf %104, %92 : vector<8x128xf32>
      %106 = arith.subf %23, %105 : vector<8x128xf32>
      %cst_42 = arith.constant 0.000000e+00 : f32
      %107 = vector.broadcast %cst_42 : f32 to vector<8x128xf32>
      %108 = arith.subf %107, %106 : vector<8x128xf32>
      %109 = vector.broadcast %103 : vector<8x1xf32> to vector<8x128xf32>
      %110 = arith.mulf %108, %109 : vector<8x128xf32>
      %cst_43 = arith.constant 0.899999976 : f32
      %111 = vector.broadcast %cst_43 : f32 to vector<8x128xf32>
      %112 = arith.mulf %111, %81 : vector<8x128xf32>
      %cst_44 = arith.constant 1.000000e-01 : f32
      %113 = vector.broadcast %cst_44 : f32 to vector<8x128xf32>
      %114 = arith.mulf %113, %110 : vector<8x128xf32>
      %115 = arith.subf %112, %114 : vector<8x128xf32>
      %cst_45 = arith.constant 3.000000e+01 : f32
      %116 = vector.broadcast %cst_45 : f32 to vector<8x128xf32>
      %117 = arith.mulf %116, %115 : vector<8x128xf32>
      %118 = arith.addf %92, %117 : vector<8x128xf32>
      %119 = arith.mulf %118, %118 : vector<8x128xf32>
      %cst_46 = arith.constant dense<0.000000e+00> : vector<8xf32>
      %120 = vector.multi_reduction <add>, %119, %cst_46 [1] : vector<8x128xf32> to vector<8xf32>
      %121 = vector.shape_cast %120 : vector<8xf32> to vector<8x1xf32>
      %cst_47 = arith.constant 9.99999996E-13 : f32
      %122 = vector.broadcast %cst_47 : f32 to vector<8x1xf32>
      %123 = arith.addf %121, %122 : vector<8x1xf32>
      %124 = math.rsqrt %123 : vector<8x1xf32>
      %125 = vector.broadcast %124 : vector<8x1xf32> to vector<8x128xf32>
      %126 = arith.mulf %118, %125 : vector<8x128xf32>
      %c3_i32 = arith.constant 3 : i32
      %127 = arith.mulf %126, %23 : vector<8x128xf32>
      %cst_48 = arith.constant dense<0.000000e+00> : vector<8xf32>
      %128 = vector.multi_reduction <add>, %127, %cst_48 [1] : vector<8x128xf32> to vector<8xf32>
      %129 = vector.shape_cast %128 : vector<8xf32> to vector<8x1xf32>
      %130 = arith.mulf %129, %129 : vector<8x1xf32>
      %cst_49 = arith.constant 1.000000e+00 : f32
      %131 = vector.broadcast %cst_49 : f32 to vector<8x1xf32>
      %132 = arith.subf %131, %130 : vector<8x1xf32>
      %cst_50 = arith.constant 0.000000e+00 : f32
      %133 = vector.broadcast %cst_50 : f32 to vector<8x1xf32>
      %134 = arith.maximumf %132, %133 : vector<8x1xf32>
      %cst_51 = arith.constant 9.99999996E-13 : f32
      %135 = vector.broadcast %cst_51 : f32 to vector<8x1xf32>
      %136 = arith.addf %134, %135 : vector<8x1xf32>
      %137 = math.rsqrt %136 : vector<8x1xf32>
      %138 = vector.broadcast %129 : vector<8x1xf32> to vector<8x128xf32>
      %139 = arith.mulf %138, %126 : vector<8x128xf32>
      %140 = arith.subf %23, %139 : vector<8x128xf32>
      %cst_52 = arith.constant 0.000000e+00 : f32
      %141 = vector.broadcast %cst_52 : f32 to vector<8x128xf32>
      %142 = arith.subf %141, %140 : vector<8x128xf32>
      %143 = vector.broadcast %137 : vector<8x1xf32> to vector<8x128xf32>
      %144 = arith.mulf %142, %143 : vector<8x128xf32>
      %cst_53 = arith.constant 0.899999976 : f32
      %145 = vector.broadcast %cst_53 : f32 to vector<8x128xf32>
      %146 = arith.mulf %145, %115 : vector<8x128xf32>
      %cst_54 = arith.constant 1.000000e-01 : f32
      %147 = vector.broadcast %cst_54 : f32 to vector<8x128xf32>
      %148 = arith.mulf %147, %144 : vector<8x128xf32>
      %149 = arith.subf %146, %148 : vector<8x128xf32>
      %cst_55 = arith.constant 3.000000e+01 : f32
      %150 = vector.broadcast %cst_55 : f32 to vector<8x128xf32>
      %151 = arith.mulf %150, %149 : vector<8x128xf32>
      %152 = arith.addf %126, %151 : vector<8x128xf32>
      %153 = arith.mulf %152, %152 : vector<8x128xf32>
      %cst_56 = arith.constant dense<0.000000e+00> : vector<8xf32>
      %154 = vector.multi_reduction <add>, %153, %cst_56 [1] : vector<8x128xf32> to vector<8xf32>
      %155 = vector.shape_cast %154 : vector<8xf32> to vector<8x1xf32>
      %cst_57 = arith.constant 9.99999996E-13 : f32
      %156 = vector.broadcast %cst_57 : f32 to vector<8x1xf32>
      %157 = arith.addf %155, %156 : vector<8x1xf32>
      %158 = math.rsqrt %157 : vector<8x1xf32>
      %159 = vector.broadcast %158 : vector<8x1xf32> to vector<8x128xf32>
      %160 = arith.mulf %152, %159 : vector<8x128xf32>
      %c4_i32 = arith.constant 4 : i32
      %161 = arith.mulf %160, %23 : vector<8x128xf32>
      %cst_58 = arith.constant dense<0.000000e+00> : vector<8xf32>
      %162 = vector.multi_reduction <add>, %161, %cst_58 [1] : vector<8x128xf32> to vector<8xf32>
      %163 = vector.shape_cast %162 : vector<8xf32> to vector<8x1xf32>
      %164 = arith.mulf %163, %163 : vector<8x1xf32>
      %cst_59 = arith.constant 1.000000e+00 : f32
      %165 = vector.broadcast %cst_59 : f32 to vector<8x1xf32>
      %166 = arith.subf %165, %164 : vector<8x1xf32>
      %cst_60 = arith.constant 0.000000e+00 : f32
      %167 = vector.broadcast %cst_60 : f32 to vector<8x1xf32>
      %168 = arith.maximumf %166, %167 : vector<8x1xf32>
      %cst_61 = arith.constant 9.99999996E-13 : f32
      %169 = vector.broadcast %cst_61 : f32 to vector<8x1xf32>
      %170 = arith.addf %168, %169 : vector<8x1xf32>
      %171 = math.rsqrt %170 : vector<8x1xf32>
      %172 = vector.broadcast %163 : vector<8x1xf32> to vector<8x128xf32>
      %173 = arith.mulf %172, %160 : vector<8x128xf32>
      %174 = arith.subf %23, %173 : vector<8x128xf32>
      %cst_62 = arith.constant 0.000000e+00 : f32
      %175 = vector.broadcast %cst_62 : f32 to vector<8x128xf32>
      %176 = arith.subf %175, %174 : vector<8x128xf32>
      %177 = vector.broadcast %171 : vector<8x1xf32> to vector<8x128xf32>
      %178 = arith.mulf %176, %177 : vector<8x128xf32>
      %cst_63 = arith.constant 0.899999976 : f32
      %179 = vector.broadcast %cst_63 : f32 to vector<8x128xf32>
      %180 = arith.mulf %179, %149 : vector<8x128xf32>
      %cst_64 = arith.constant 1.000000e-01 : f32
      %181 = vector.broadcast %cst_64 : f32 to vector<8x128xf32>
      %182 = arith.mulf %181, %178 : vector<8x128xf32>
      %183 = arith.subf %180, %182 : vector<8x128xf32>
      %cst_65 = arith.constant 3.000000e+01 : f32
      %184 = vector.broadcast %cst_65 : f32 to vector<8x128xf32>
      %185 = arith.mulf %184, %183 : vector<8x128xf32>
      %186 = arith.addf %160, %185 : vector<8x128xf32>
      %187 = arith.mulf %186, %186 : vector<8x128xf32>
      %cst_66 = arith.constant dense<0.000000e+00> : vector<8xf32>
      %188 = vector.multi_reduction <add>, %187, %cst_66 [1] : vector<8x128xf32> to vector<8xf32>
      %189 = vector.shape_cast %188 : vector<8xf32> to vector<8x1xf32>
      %cst_67 = arith.constant 9.99999996E-13 : f32
      %190 = vector.broadcast %cst_67 : f32 to vector<8x1xf32>
      %191 = arith.addf %189, %190 : vector<8x1xf32>
      %192 = math.rsqrt %191 : vector<8x1xf32>
      %193 = vector.broadcast %192 : vector<8x1xf32> to vector<8x128xf32>
      %194 = arith.mulf %186, %193 : vector<8x128xf32>
      %c5_i32 = arith.constant 5 : i32
      %195 = arith.mulf %194, %23 : vector<8x128xf32>
      %cst_68 = arith.constant dense<0.000000e+00> : vector<8xf32>
      %196 = vector.multi_reduction <add>, %195, %cst_68 [1] : vector<8x128xf32> to vector<8xf32>
      %197 = vector.shape_cast %196 : vector<8xf32> to vector<8x1xf32>
      %198 = arith.mulf %197, %197 : vector<8x1xf32>
      %cst_69 = arith.constant 1.000000e+00 : f32
      %199 = vector.broadcast %cst_69 : f32 to vector<8x1xf32>
      %200 = arith.subf %199, %198 : vector<8x1xf32>
      %cst_70 = arith.constant 0.000000e+00 : f32
      %201 = vector.broadcast %cst_70 : f32 to vector<8x1xf32>
      %202 = arith.maximumf %200, %201 : vector<8x1xf32>
      %cst_71 = arith.constant 9.99999996E-13 : f32
      %203 = vector.broadcast %cst_71 : f32 to vector<8x1xf32>
      %204 = arith.addf %202, %203 : vector<8x1xf32>
      %205 = math.rsqrt %204 : vector<8x1xf32>
      %206 = vector.broadcast %197 : vector<8x1xf32> to vector<8x128xf32>
      %207 = arith.mulf %206, %194 : vector<8x128xf32>
      %208 = arith.subf %23, %207 : vector<8x128xf32>
      %cst_72 = arith.constant 0.000000e+00 : f32
      %209 = vector.broadcast %cst_72 : f32 to vector<8x128xf32>
      %210 = arith.subf %209, %208 : vector<8x128xf32>
      %211 = vector.broadcast %205 : vector<8x1xf32> to vector<8x128xf32>
      %212 = arith.mulf %210, %211 : vector<8x128xf32>
      %cst_73 = arith.constant 0.899999976 : f32
      %213 = vector.broadcast %cst_73 : f32 to vector<8x128xf32>
      %214 = arith.mulf %213, %183 : vector<8x128xf32>
      %cst_74 = arith.constant 1.000000e-01 : f32
      %215 = vector.broadcast %cst_74 : f32 to vector<8x128xf32>
      %216 = arith.mulf %215, %212 : vector<8x128xf32>
      %217 = arith.subf %214, %216 : vector<8x128xf32>
      %cst_75 = arith.constant 3.000000e+01 : f32
      %218 = vector.broadcast %cst_75 : f32 to vector<8x128xf32>
      %219 = arith.mulf %218, %217 : vector<8x128xf32>
      %220 = arith.addf %194, %219 : vector<8x128xf32>
      %221 = arith.mulf %220, %220 : vector<8x128xf32>
      %cst_76 = arith.constant dense<0.000000e+00> : vector<8xf32>
      %222 = vector.multi_reduction <add>, %221, %cst_76 [1] : vector<8x128xf32> to vector<8xf32>
      %223 = vector.shape_cast %222 : vector<8xf32> to vector<8x1xf32>
      %cst_77 = arith.constant 9.99999996E-13 : f32
      %224 = vector.broadcast %cst_77 : f32 to vector<8x1xf32>
      %225 = arith.addf %223, %224 : vector<8x1xf32>
      %226 = math.rsqrt %225 : vector<8x1xf32>
      %227 = vector.broadcast %226 : vector<8x1xf32> to vector<8x128xf32>
      %228 = arith.mulf %220, %227 : vector<8x128xf32>
      %c6_i32 = arith.constant 6 : i32
      %229 = arith.mulf %228, %23 : vector<8x128xf32>
      %cst_78 = arith.constant dense<0.000000e+00> : vector<8xf32>
      %230 = vector.multi_reduction <add>, %229, %cst_78 [1] : vector<8x128xf32> to vector<8xf32>
      %231 = vector.shape_cast %230 : vector<8xf32> to vector<8x1xf32>
      %232 = arith.mulf %231, %231 : vector<8x1xf32>
      %cst_79 = arith.constant 1.000000e+00 : f32
      %233 = vector.broadcast %cst_79 : f32 to vector<8x1xf32>
      %234 = arith.subf %233, %232 : vector<8x1xf32>
      %cst_80 = arith.constant 0.000000e+00 : f32
      %235 = vector.broadcast %cst_80 : f32 to vector<8x1xf32>
      %236 = arith.maximumf %234, %235 : vector<8x1xf32>
      %cst_81 = arith.constant 9.99999996E-13 : f32
      %237 = vector.broadcast %cst_81 : f32 to vector<8x1xf32>
      %238 = arith.addf %236, %237 : vector<8x1xf32>
      %239 = math.rsqrt %238 : vector<8x1xf32>
      %240 = vector.broadcast %231 : vector<8x1xf32> to vector<8x128xf32>
      %241 = arith.mulf %240, %228 : vector<8x128xf32>
      %242 = arith.subf %23, %241 : vector<8x128xf32>
      %cst_82 = arith.constant 0.000000e+00 : f32
      %243 = vector.broadcast %cst_82 : f32 to vector<8x128xf32>
      %244 = arith.subf %243, %242 : vector<8x128xf32>
      %245 = vector.broadcast %239 : vector<8x1xf32> to vector<8x128xf32>
      %246 = arith.mulf %244, %245 : vector<8x128xf32>
      %cst_83 = arith.constant 0.899999976 : f32
      %247 = vector.broadcast %cst_83 : f32 to vector<8x128xf32>
      %248 = arith.mulf %247, %217 : vector<8x128xf32>
      %cst_84 = arith.constant 1.000000e-01 : f32
      %249 = vector.broadcast %cst_84 : f32 to vector<8x128xf32>
      %250 = arith.mulf %249, %246 : vector<8x128xf32>
      %251 = arith.subf %248, %250 : vector<8x128xf32>
      %cst_85 = arith.constant 3.000000e+01 : f32
      %252 = vector.broadcast %cst_85 : f32 to vector<8x128xf32>
      %253 = arith.mulf %252, %251 : vector<8x128xf32>
      %254 = arith.addf %228, %253 : vector<8x128xf32>
      %255 = arith.mulf %254, %254 : vector<8x128xf32>
      %cst_86 = arith.constant dense<0.000000e+00> : vector<8xf32>
      %256 = vector.multi_reduction <add>, %255, %cst_86 [1] : vector<8x128xf32> to vector<8xf32>
      %257 = vector.shape_cast %256 : vector<8xf32> to vector<8x1xf32>
      %cst_87 = arith.constant 9.99999996E-13 : f32
      %258 = vector.broadcast %cst_87 : f32 to vector<8x1xf32>
      %259 = arith.addf %257, %258 : vector<8x1xf32>
      %260 = math.rsqrt %259 : vector<8x1xf32>
      %261 = vector.broadcast %260 : vector<8x1xf32> to vector<8x128xf32>
      %262 = arith.mulf %254, %261 : vector<8x128xf32>
      %c7_i32 = arith.constant 7 : i32
      %263 = arith.mulf %262, %23 : vector<8x128xf32>
      %cst_88 = arith.constant dense<0.000000e+00> : vector<8xf32>
      %264 = vector.multi_reduction <add>, %263, %cst_88 [1] : vector<8x128xf32> to vector<8xf32>
      %265 = vector.shape_cast %264 : vector<8xf32> to vector<8x1xf32>
      %266 = arith.mulf %265, %265 : vector<8x1xf32>
      %cst_89 = arith.constant 1.000000e+00 : f32
      %267 = vector.broadcast %cst_89 : f32 to vector<8x1xf32>
      %268 = arith.subf %267, %266 : vector<8x1xf32>
      %cst_90 = arith.constant 0.000000e+00 : f32
      %269 = vector.broadcast %cst_90 : f32 to vector<8x1xf32>
      %270 = arith.maximumf %268, %269 : vector<8x1xf32>
      %cst_91 = arith.constant 9.99999996E-13 : f32
      %271 = vector.broadcast %cst_91 : f32 to vector<8x1xf32>
      %272 = arith.addf %270, %271 : vector<8x1xf32>
      %273 = math.rsqrt %272 : vector<8x1xf32>
      %274 = vector.broadcast %265 : vector<8x1xf32> to vector<8x128xf32>
      %275 = arith.mulf %274, %262 : vector<8x128xf32>
      %276 = arith.subf %23, %275 : vector<8x128xf32>
      %cst_92 = arith.constant 0.000000e+00 : f32
      %277 = vector.broadcast %cst_92 : f32 to vector<8x128xf32>
      %278 = arith.subf %277, %276 : vector<8x128xf32>
      %279 = vector.broadcast %273 : vector<8x1xf32> to vector<8x128xf32>
      %280 = arith.mulf %278, %279 : vector<8x128xf32>
      %cst_93 = arith.constant 0.899999976 : f32
      %281 = vector.broadcast %cst_93 : f32 to vector<8x128xf32>
      %282 = arith.mulf %281, %251 : vector<8x128xf32>
      %cst_94 = arith.constant 1.000000e-01 : f32
      %283 = vector.broadcast %cst_94 : f32 to vector<8x128xf32>
      %284 = arith.mulf %283, %280 : vector<8x128xf32>
      %285 = arith.subf %282, %284 : vector<8x128xf32>
      %cst_95 = arith.constant 3.000000e+01 : f32
      %286 = vector.broadcast %cst_95 : f32 to vector<8x128xf32>
      %287 = arith.mulf %286, %285 : vector<8x128xf32>
      %288 = arith.addf %262, %287 : vector<8x128xf32>
      %289 = arith.mulf %288, %288 : vector<8x128xf32>
      %cst_96 = arith.constant dense<0.000000e+00> : vector<8xf32>
      %290 = vector.multi_reduction <add>, %289, %cst_96 [1] : vector<8x128xf32> to vector<8xf32>
      %291 = vector.shape_cast %290 : vector<8xf32> to vector<8x1xf32>
      %cst_97 = arith.constant 9.99999996E-13 : f32
      %292 = vector.broadcast %cst_97 : f32 to vector<8x1xf32>
      %293 = arith.addf %291, %292 : vector<8x1xf32>
      %294 = math.rsqrt %293 : vector<8x1xf32>
      %295 = vector.broadcast %294 : vector<8x1xf32> to vector<8x128xf32>
      %296 = arith.mulf %288, %295 : vector<8x128xf32>
      %c8_i32 = arith.constant 8 : i32
      %297 = arith.mulf %296, %23 : vector<8x128xf32>
      %cst_98 = arith.constant dense<0.000000e+00> : vector<8xf32>
      %298 = vector.multi_reduction <add>, %297, %cst_98 [1] : vector<8x128xf32> to vector<8xf32>
      %299 = vector.shape_cast %298 : vector<8xf32> to vector<8x1xf32>
      %300 = arith.mulf %299, %299 : vector<8x1xf32>
      %cst_99 = arith.constant 1.000000e+00 : f32
      %301 = vector.broadcast %cst_99 : f32 to vector<8x1xf32>
      %302 = arith.subf %301, %300 : vector<8x1xf32>
      %cst_100 = arith.constant 0.000000e+00 : f32
      %303 = vector.broadcast %cst_100 : f32 to vector<8x1xf32>
      %304 = arith.maximumf %302, %303 : vector<8x1xf32>
      %cst_101 = arith.constant 9.99999996E-13 : f32
      %305 = vector.broadcast %cst_101 : f32 to vector<8x1xf32>
      %306 = arith.addf %304, %305 : vector<8x1xf32>
      %307 = math.rsqrt %306 : vector<8x1xf32>
      %308 = vector.broadcast %299 : vector<8x1xf32> to vector<8x128xf32>
      %309 = arith.mulf %308, %296 : vector<8x128xf32>
      %310 = arith.subf %23, %309 : vector<8x128xf32>
      %cst_102 = arith.constant 0.000000e+00 : f32
      %311 = vector.broadcast %cst_102 : f32 to vector<8x128xf32>
      %312 = arith.subf %311, %310 : vector<8x128xf32>
      %313 = vector.broadcast %307 : vector<8x1xf32> to vector<8x128xf32>
      %314 = arith.mulf %312, %313 : vector<8x128xf32>
      %cst_103 = arith.constant 0.899999976 : f32
      %315 = vector.broadcast %cst_103 : f32 to vector<8x128xf32>
      %316 = arith.mulf %315, %285 : vector<8x128xf32>
      %cst_104 = arith.constant 1.000000e-01 : f32
      %317 = vector.broadcast %cst_104 : f32 to vector<8x128xf32>
      %318 = arith.mulf %317, %314 : vector<8x128xf32>
      %319 = arith.subf %316, %318 : vector<8x128xf32>
      %cst_105 = arith.constant 3.000000e+01 : f32
      %320 = vector.broadcast %cst_105 : f32 to vector<8x128xf32>
      %321 = arith.mulf %320, %319 : vector<8x128xf32>
      %322 = arith.addf %296, %321 : vector<8x128xf32>
      %323 = arith.mulf %322, %322 : vector<8x128xf32>
      %cst_106 = arith.constant dense<0.000000e+00> : vector<8xf32>
      %324 = vector.multi_reduction <add>, %323, %cst_106 [1] : vector<8x128xf32> to vector<8xf32>
      %325 = vector.shape_cast %324 : vector<8xf32> to vector<8x1xf32>
      %cst_107 = arith.constant 9.99999996E-13 : f32
      %326 = vector.broadcast %cst_107 : f32 to vector<8x1xf32>
      %327 = arith.addf %325, %326 : vector<8x1xf32>
      %328 = math.rsqrt %327 : vector<8x1xf32>
      %329 = vector.broadcast %328 : vector<8x1xf32> to vector<8x128xf32>
      %330 = arith.mulf %322, %329 : vector<8x128xf32>
      %c9_i32 = arith.constant 9 : i32
      %331 = arith.mulf %330, %23 : vector<8x128xf32>
      %cst_108 = arith.constant dense<0.000000e+00> : vector<8xf32>
      %332 = vector.multi_reduction <add>, %331, %cst_108 [1] : vector<8x128xf32> to vector<8xf32>
      %333 = vector.shape_cast %332 : vector<8xf32> to vector<8x1xf32>
      %334 = arith.mulf %333, %333 : vector<8x1xf32>
      %cst_109 = arith.constant 1.000000e+00 : f32
      %335 = vector.broadcast %cst_109 : f32 to vector<8x1xf32>
      %336 = arith.subf %335, %334 : vector<8x1xf32>
      %cst_110 = arith.constant 0.000000e+00 : f32
      %337 = vector.broadcast %cst_110 : f32 to vector<8x1xf32>
      %338 = arith.maximumf %336, %337 : vector<8x1xf32>
      %cst_111 = arith.constant 9.99999996E-13 : f32
      %339 = vector.broadcast %cst_111 : f32 to vector<8x1xf32>
      %340 = arith.addf %338, %339 : vector<8x1xf32>
      %341 = math.rsqrt %340 : vector<8x1xf32>
      %342 = vector.broadcast %333 : vector<8x1xf32> to vector<8x128xf32>
      %343 = arith.mulf %342, %330 : vector<8x128xf32>
      %344 = arith.subf %23, %343 : vector<8x128xf32>
      %cst_112 = arith.constant 0.000000e+00 : f32
      %345 = vector.broadcast %cst_112 : f32 to vector<8x128xf32>
      %346 = arith.subf %345, %344 : vector<8x128xf32>
      %347 = vector.broadcast %341 : vector<8x1xf32> to vector<8x128xf32>
      %348 = arith.mulf %346, %347 : vector<8x128xf32>
      %cst_113 = arith.constant 0.899999976 : f32
      %349 = vector.broadcast %cst_113 : f32 to vector<8x128xf32>
      %350 = arith.mulf %349, %319 : vector<8x128xf32>
      %cst_114 = arith.constant 1.000000e-01 : f32
      %351 = vector.broadcast %cst_114 : f32 to vector<8x128xf32>
      %352 = arith.mulf %351, %348 : vector<8x128xf32>
      %353 = arith.subf %350, %352 : vector<8x128xf32>
      %cst_115 = arith.constant 3.000000e+01 : f32
      %354 = vector.broadcast %cst_115 : f32 to vector<8x128xf32>
      %355 = arith.mulf %354, %353 : vector<8x128xf32>
      %356 = arith.addf %330, %355 : vector<8x128xf32>
      %357 = arith.mulf %356, %356 : vector<8x128xf32>
      %cst_116 = arith.constant dense<0.000000e+00> : vector<8xf32>
      %358 = vector.multi_reduction <add>, %357, %cst_116 [1] : vector<8x128xf32> to vector<8xf32>
      %359 = vector.shape_cast %358 : vector<8xf32> to vector<8x1xf32>
      %cst_117 = arith.constant 9.99999996E-13 : f32
      %360 = vector.broadcast %cst_117 : f32 to vector<8x1xf32>
      %361 = arith.addf %359, %360 : vector<8x1xf32>
      %362 = math.rsqrt %361 : vector<8x1xf32>
      %363 = vector.broadcast %362 : vector<8x1xf32> to vector<8x128xf32>
      %364 = arith.mulf %356, %363 : vector<8x128xf32>
      %c0_118 = arith.constant 0 : index
      %c0_119 = arith.constant 0 : index
      %365 = vector.load %arg5[%c0_118, %c0_119] : memref<128x128xf32, #tpu.memory_space<vmem>>, vector<128x128xf32>
      %cst_120 = arith.constant dense<0.000000e+00> : vector<8x128xf32>
      %366 = tpu.matmul %364, %365, %cst_120 {dimension_numbers = #tpu.dot_dimension_numbers<[1], [0], [0], [1], [0, 0, 1, 1], [], []>} : vector<8x128xf32>, vector<128x128xf32>, vector<8x128xf32> -> vector<8x128xf32>
      %c0_121 = arith.constant 0 : index
      %367 = memref.load %arg6[%c0_121] : memref<1xf32, #tpu.memory_space<smem>>
      %368 = vector.broadcast %367 : f32 to vector<8x128xf32>
      %369 = arith.mulf %366, %368 : vector<8x128xf32>
      %c0_122 = arith.constant 0 : index
      %c0_123 = arith.constant 0 : index
      %370 = vector.load %arg7[%c0_122, %c0_123] : memref<8x128xf32, #tpu.memory_space<vmem>>, vector<8x128xf32>
      tpu.vector_store %arg7[%c0_122, %c0_123], %369 {strides = array<i32>} : memref<8x128xf32, #tpu.memory_space<vmem>>, vector<8x128xf32>,
    } else {
    }
    return
  }
  func.func @transform_0(%arg0: i32, %arg1: i32) -> (i32, i32) {
    %c0_i32 = arith.constant 0 : i32
    return %arg0, %arg1 : i32, i32
  }
  func.func @transform_1(%arg0: i32, %arg1: i32) -> (i32, i32) {
    %c0_i32 = arith.constant 0 : i32
    %c0_i32_0 = arith.constant 0 : i32
    return %arg1, %c0_i32 : i32, i32
  }
  func.func @transform_2(%arg0: i32, %arg1: i32) -> (i32, i32) {
    %c0_i32 = arith.constant 0 : i32
    %c0_i32_0 = arith.constant 0 : i32
    %c0_i32_1 = arith.constant 0 : i32
    return %c0_i32, %c0_i32_0 : i32, i32
  }
  func.func @transform_3(%arg0: i32, %arg1: i32) -> (i32, i32) {
    %c0_i32 = arith.constant 0 : i32
    %c0_i32_0 = arith.constant 0 : i32
    %c0_i32_1 = arith.constant 0 : i32
    return %c0_i32, %c0_i32_0 : i32, i32
  }
  func.func @transform_4(%arg0: i32, %arg1: i32) -> i32 {
    %c0_i32 = arith.constant 0 : i32
    %c0_i32_0 = arith.constant 0 : i32
    return %c0_i32 : i32
  }
  func.func @transform_5(%arg0: i32, %arg1: i32) -> (i32, i32) {
    %c0_i32 = arith.constant 0 : i32
    %c0_i32_0 = arith.constant 0 : i32
    return %arg0, %c0_i32 : i32, i32
  }
}

</mosaic_0001>

<llo_original>
// kernel: tpu_custom_call.1
$region0: #{tpu_custom_call.1}
  #allocation0 [shape = 'u32[]', space=smem, size = 0x4, offset = 0x4, fixed_abs, tag = 'smem constant byte address 0x4 - core index']
  #allocation1 [shape = 'u32[72,128]{1,0:T(1,128)}', space=vmem, size = 0x9000, scoped, tag = 'internal scratch']
  #allocation2 [shape = 'f32[8,128]{1,0:T(8,128)}', space=vmem, size = 0x1000, scoped, tag = 'scratch operand']
  #allocation3 [shape = 'f32[1]{0:T(128)S(6)}', space=smem, size = 0x200, scoped, tag = 'scoped memory for tpu_custom_call.1']
  %s0 = inlined_call_operand.hbm [shape: bf16[8,768], index: 0, kind: input, shape index: {}]
  %s1 = inlined_call_operand.hbm [shape: bf16[768,128], index: 1, kind: input, shape index: {}]
  %s2 = inlined_call_operand.vmem [shape: f32[1,128], index: 2, kind: input, shape index: {}]
  %s3 = inlined_call_operand.hbm [shape: f32[128,128], index: 3, kind: input, shape index: {}]
  %s4 = inlined_call_operand.<no memory space> [shape: f32[1], index: 4, kind: input, shape index: {}]
  %s5 = inlined_call_operand.hbm [shape: f32[8,128], index: 5, kind: output, shape index: {}]
  %s6 = sld [smem:[#allocation0]]
  $region73: #{tpu_custom_call.1} parent=0
    _
  %s8 = ssub.s32 1, %s6
  %s9 = scalar_select 0, %s8, %s6
  %10 = sst [smem:[#allocation3]] %s4
  $region1: #{tpu_custom_call.1} parent=0
    #allocation4 [shape = 'u8[8192]{0}', space=vmem, size = 0x2000, scoped, tag = 'input window, operand 0']
    #allocation5 [shape = 's32[2]{0}', space=sflag, size = 0x8, scoped, tag = 'scoped memory for tpu_custom_call.1']
    #allocation6 [shape = 's32[2]{0}', space=sflag, size = 0x8, scoped, tag = 'scoped memory for tpu_custom_call.1']
    #allocation7 [shape = 'u8[131072]{0}', space=vmem, size = 0x20000, scoped, tag = 'input window, operand 1']
    #allocation8 [shape = 's32[2]{0}', space=sflag, size = 0x8, scoped, tag = 'scoped memory for tpu_custom_call.1']
    #allocation9 [shape = 'u8[65536]{0}', space=vmem, size = 0x10000, scoped, tag = 'input window, operand 3, single buffered']
    #allocation10 [shape = 'u8[4096]{0}', space=vmem, size = 0x1000, scoped, tag = 'output window, operand 0, single buffered']
    %11 = vsyncpa [#allocation5], 0
    %s12 = scalar_lea.sflag [#allocation5], 1
    %13 = vsyncpa %s12, 0
    %14 = vsyncpa [#allocation8], 0
    %s15 = scalar_lea.sflag [#allocation8], 1
    %16 = vsyncpa %s15, 0
    %17 = vsyncpa [#allocation6], 0
    loop: start=0, step=1, limit=5
    $region2: #{tpu_custom_call.1} parent=1 // loop_pre_header
      _
    $region3: #{tpu_custom_call.1} parent=1 // loop_header
      %s19 = sphi 0, %s23
      %p20 = scmp.ge.s32.totalorder %s19, 5
      %s26 = sphi 0, %s38
      %s27 = sphi 0, %s34
      %s28 = sphi 0, %s26
      %s29 = sphi 0, %s27
      %s30 = sphi 0, %s28
      %s31 = sphi 0, %s29
      %s43 = sphi 0, %s45
      %s46 = sphi 0, %s43
      %s47 = sphi 0, %s46
      %s63 = sphi 0, %s47
      %s69 = sphi 0, %s71
      %s72 = sphi 0, %s69
      %s73 = sphi 0, %s72
      %s89 = sphi 0, %s73
      %s93 = sphi 0, %s93
      %s95 = sphi 0, %s93
      %s96 = sphi 0, %s95
      %s110 = sphi 0, %s96
      %s114 = sphi 0, %s114
      %s116 = sphi 0, %s114
      %s117 = sphi 0, %s116
      %s131 = sphi 0, %s117
      %s135 = sphi 0, %s135
      %s137 = sphi 0, %s135
      %s138 = sphi 0, %s137
      %s152 = sphi 0, %s138
      %s158 = sphi 0, %s160
      %s161 = sphi 0, %s158
      %s162 = sphi 0, %s161
      %s178 = sphi 0, %s162
    $region4: #{tpu_custom_call.1} parent=1 // loop_header_branch
      %22 = sbr.rel (%p20) target = $region8
    $region5: #{tpu_custom_call.1} parent=1 // loop_body
      %s24 = ssub.s32 %s19, 1
      %s25 = ssub.s32 %s19, 2
      %s32 = sadd.s32 1, %s27
      %p33 = scmp.ge.s32.totalorder %s32, 3
      %s34 = scalar_select %p33, 0, %s32
      %s35 = sadd.s32 1, %s26
      %s36 = scalar_select %p33, %s35, %s26
      %p37 = scmp.ge.s32.totalorder %s36, 1
      %s38 = scalar_select %p37, 0, %s36
      %s39 = ssub.s32 %s26, %s38
      %s40 = ssub.s32 %s27, %s34
      %s41 = sor.u32 %s39, %s40
      %p42 = scmp.eq.s32.totalorder %s41, 0
      %s44 = sadd.s32 %s43, 1
      %s45 = scalar_select %p42, %s43, %s44
      %p48 = pneg %p42
      %p49 = scmp.eq.s32.totalorder %s19, 2
      %p50 = por %p48, %p49
      %p51 = scmp.ne.s32.totalorder %s43, %s46
      %p52 = scmp.eq.s32.totalorder %s19, 0
      %p53 = por %p51, %p52
      %p54 = scmp.ne.s32.totalorder %s43, %s46
      %p55 = scmp.eq.s32.totalorder %s24, 2
      %p56 = por %p54, %p55
      %p57 = scmp.ne.s32.totalorder %s46, %s47
      %p58 = scmp.eq.s32.totalorder %s24, 0
      %p59 = por %p57, %p58
      %p60 = scmp.ne.s32.totalorder %s46, %s47
      %p61 = scmp.eq.s32.totalorder %s25, 2
      %p62 = por %p60, %p61
      %p64 = scmp.ne.s32.totalorder %s47, %s63
      %p65 = scmp.eq.s32.totalorder %s25, 0
      %p66 = por %p64, %p65
      %s67 = ssub.s32 %s27, %s34
      %p68 = scmp.eq.s32.totalorder %s67, 0
      %s70 = sadd.s32 %s69, 1
      %s71 = scalar_select %p68, %s69, %s70
      %p74 = pneg %p68
      %p75 = scmp.eq.s32.totalorder %s19, 2
      %p76 = por %p74, %p75
      %p77 = scmp.ne.s32.totalorder %s69, %s72
      %p78 = scmp.eq.s32.totalorder %s19, 0
      %p79 = por %p77, %p78
      %p80 = scmp.ne.s32.totalorder %s69, %s72
      %p81 = scmp.eq.s32.totalorder %s24, 2
      %p82 = por %p80, %p81
      %p83 = scmp.ne.s32.totalorder %s72, %s73
      %p84 = scmp.eq.s32.totalorder %s24, 0
      %p85 = por %p83, %p84
      %p86 = scmp.ne.s32.totalorder %s72, %s73
      %p87 = scmp.eq.s32.totalorder %s25, 2
      %p88 = por %p86, %p87
      %p90 = scmp.ne.s32.totalorder %s73, %s89
      %p91 = scmp.eq.s32.totalorder %s25, 0
      %p92 = por %p90, %p91
      %s94 = sadd.s32 %s93, 1
      %p97 = scmp.eq.s32.totalorder %s19, 2
      %p98 = scmp.ne.s32.totalorder %s93, %s95
      %p99 = scmp.eq.s32.totalorder %s19, 0
      %p100 = por %p98, %p99
      %p101 = scmp.ne.s32.totalorder %s93, %s95
      %p102 = scmp.eq.s32.totalorder %s24, 2
      %p103 = por %p101, %p102
      %p104 = scmp.ne.s32.totalorder %s95, %s96
      %p105 = scmp.eq.s32.totalorder %s24, 0
      %p106 = por %p104, %p105
      %p107 = scmp.ne.s32.totalorder %s95, %s96
      %p108 = scmp.eq.s32.totalorder %s25, 2
      %p109 = por %p107, %p108
      %p111 = scmp.ne.s32.totalorder %s96, %s110
      %p112 = scmp.eq.s32.totalorder %s25, 0
      %p113 = por %p111, %p112
      %s115 = sadd.s32 %s114, 1
      %p118 = scmp.eq.s32.totalorder %s19, 2
      %p119 = scmp.ne.s32.totalorder %s114, %s116
      %p120 = scmp.eq.s32.totalorder %s19, 0
      %p121 = por %p119, %p120
      %p122 = scmp.ne.s32.totalorder %s114, %s116
      %p123 = scmp.eq.s32.totalorder %s24, 2
      %p124 = por %p122, %p123
      %p125 = scmp.ne.s32.totalorder %s116, %s117
      %p126 = scmp.eq.s32.totalorder %s24, 0
      %p127 = por %p125, %p126
      %p128 = scmp.ne.s32.totalorder %s116, %s117
      %p129 = scmp.eq.s32.totalorder %s25, 2
      %p130 = por %p128, %p129
      %p132 = scmp.ne.s32.totalorder %s117, %s131
      %p133 = scmp.eq.s32.totalorder %s25, 0
      %p134 = por %p132, %p133
      %s136 = sadd.s32 %s135, 1
      %p139 = scmp.eq.s32.totalorder %s19, 2
      %p140 = scmp.ne.s32.totalorder %s135, %s137
      %p141 = scmp.eq.s32.totalorder %s19, 0
      %p142 = por %p140, %p141
      %p143 = scmp.ne.s32.totalorder %s135, %s137
      %p144 = scmp.eq.s32.totalorder %s24, 2
      %p145 = por %p143, %p144
      %p146 = scmp.ne.s32.totalorder %s137, %s138
      %p147 = scmp.eq.s32.totalorder %s24, 0
      %p148 = por %p146, %p147
      %p149 = scmp.ne.s32.totalorder %s137, %s138
      %p150 = scmp.eq.s32.totalorder %s25, 2
      %p151 = por %p149, %p150
      %p153 = scmp.ne.s32.totalorder %s138, %s152
      %p154 = scmp.eq.s32.totalorder %s25, 0
      %p155 = por %p153, %p154
      %s156 = ssub.s32 %s26, %s38
      %p157 = scmp.eq.s32.totalorder %s156, 0
      %s159 = sadd.s32 %s158, 1
      %s160 = scalar_select %p157, %s158, %s159
      %p163 = pneg %p157
      %p164 = scmp.eq.s32.totalorder %s19, 2
      %p165 = por %p163, %p164
      %p166 = scmp.ne.s32.totalorder %s158, %s161
      %p167 = scmp.eq.s32.totalorder %s19, 0
      %p168 = por %p166, %p167
      %p169 = scmp.ne.s32.totalorder %s158, %s161
      %p170 = scmp.eq.s32.totalorder %s24, 2
      %p171 = por %p169, %p170
      %p172 = scmp.ne.s32.totalorder %s161, %s162
      %p173 = scmp.eq.s32.totalorder %s24, 0
      %p174 = por %p172, %p173
      %p175 = scmp.ne.s32.totalorder %s161, %s162
      %p176 = scmp.eq.s32.totalorder %s25, 2
      %p177 = por %p175, %p176
      %p179 = scmp.ne.s32.totalorder %s162, %s178
      %p180 = scmp.eq.s32.totalorder %s25, 0
      %p181 = por %p179, %p180
      %p182 = scmp.le.s32.totalorder 1, %s19
      %p183 = scmp.lt.s32.totalorder %s19, 4
      %p184 = pnand %p182, %p183
      %p185 = pneg %p184
      // Predicated region
      $region9: #{tpu_custom_call.1} parent=5 // pred_check
        _
      $region10: #{tpu_custom_call.1} parent=5 // pred_check_branch
        %187 = sbr.rel (%p184) target = $region12
      $region11: #{tpu_custom_call.1} parent=5 // pred_region
        %s188 = ssub.s32 %s19, 1
        // Predicated region
        $region13: #{tpu_custom_call.1} parent=11 // pred_check
          %p189 = pneg %p106
        $region14: #{tpu_custom_call.1} parent=11 // pred_check_branch
          %191 = sbr.rel (%p189) target = $region16
        $region15: #{tpu_custom_call.1} parent=11 // pred_region
          _
        $region16: #{tpu_custom_call.1} parent=11 // pred_fallthru
          _
        // Predicated region
        $region17: #{tpu_custom_call.1} parent=11 // pred_check
          %p192 = pneg %p127
        $region18: #{tpu_custom_call.1} parent=11 // pred_check_branch
          %194 = sbr.rel (%p192) target = $region20
        $region19: #{tpu_custom_call.1} parent=11 // pred_region
          %196 = vsyncadd [#allocation8], 0
          %s197 = sshll.u32 %s3, 4
          %s198 = int_to_ptr.hbm [resolvable:$true] %s197
          %s199 = sshll.u32 [#allocation9], 4
          %s200 = int_to_ptr.vmem [resolvable:$true] %s199
          %205 = dma.hbm_to_vmem [thread:$0]  %s198, 2048, %s200, [#allocation8], 128, 128, 8
        $region20: #{tpu_custom_call.1} parent=11 // pred_fallthru
          _
        // Predicated region
        $region21: #{tpu_custom_call.1} parent=11 // pred_check
          %p206 = pneg %p148
        $region22: #{tpu_custom_call.1} parent=11 // pred_check_branch
          %208 = sbr.rel (%p206) target = $region24
        $region23: #{tpu_custom_call.1} parent=11 // pred_region
          _
        $region24: #{tpu_custom_call.1} parent=11 // pred_fallthru
          _
      $region12: #{tpu_custom_call.1} parent=5 // pred_fallthru
        _
      %p209 = scmp.lt.s32.totalorder %s19, 3
      // Predicated region
      $region25: #{tpu_custom_call.1} parent=5 // pred_check
        %p210 = pneg %p209
      $region26: #{tpu_custom_call.1} parent=5 // pred_check_branch
        %212 = sbr.rel (%p210) target = $region28
      $region27: #{tpu_custom_call.1} parent=5 // pred_region
        // Predicated region
        $region29: #{tpu_custom_call.1} parent=27 // pred_check
          %p213 = pneg %p53
        $region30: #{tpu_custom_call.1} parent=27 // pred_check_branch
          %215 = sbr.rel (%p213) target = $region32
        $region31: #{tpu_custom_call.1} parent=27 // pred_region
          %s216 = sand.u32 %s43, 1
          %s217 = scalar_lea.sflag [#allocation5], %s216
          %s218 = sand.u32 %s43, 1
          %s219 = smul.addr %s218, 8
          %s220 = scalar_lea.vmem [#allocation4], %s219
          %s221 = smul.u32 2, %s27
          %223 = vsyncadd %s217, 0
          %s224 = smul.addr %s26, 6
          %s225 = sadd.s32 %s221, %s224
          %s226 = smul.addr %s225, 4
          %s227 = scalar_lea.hbm %s0, %s226
          %s229 = sshll.u32 %s227, 4
          %s230 = int_to_ptr.hbm [resolvable:$true] %s229
          %s231 = sshll.u32 %s220, 4
          %s232 = int_to_ptr.vmem [resolvable:$true] %s231
          %234 = dma.hbm_to_vmem [thread:$0]  %s230, 128, %s232, %s217
        $region32: #{tpu_custom_call.1} parent=27 // pred_fallthru
          _
        // Predicated region
        $region33: #{tpu_custom_call.1} parent=27 // pred_check
          %p235 = pneg %p79
        $region34: #{tpu_custom_call.1} parent=27 // pred_check_branch
          %237 = sbr.rel (%p235) target = $region36
        $region35: #{tpu_custom_call.1} parent=27 // pred_region
          %s238 = sand.u32 %s19, 1
          %s239 = scalar_lea.sflag [#allocation8], %s238
          %s240 = sand.u32 %s69, 1
          %s241 = smul.addr %s240, 128
          %s242 = scalar_lea.vmem [#allocation7], %s241
          %s243 = smul.u32 32, %s27
          %245 = vsyncadd %s239, 0
          %s246 = smul.addr %s243, 4
          %s247 = scalar_lea.hbm %s1, %s246
          %s248 = sshll.u32 %s247, 4
          %s249 = int_to_ptr.hbm [resolvable:$true] %s248
          %s250 = sshll.u32 %s242, 4
          %s251 = int_to_ptr.vmem [resolvable:$true] %s250
          %256 = dma.hbm_to_vmem [thread:$0]  %s249, 2048, %s251, %s239, 64, 64, 4
        $region36: #{tpu_custom_call.1} parent=27 // pred_fallthru
          _
      $region28: #{tpu_custom_call.1} parent=5 // pred_fallthru
        _
      %p257 = scmp.le.s32.totalorder 1, %s19
      %p258 = scmp.lt.s32.totalorder %s19, 4
      %p259 = pnand %p257, %p258
      %p260 = pneg %p259
      // Predicated region
      $region37: #{tpu_custom_call.1} parent=5 // pred_check
        _
      $region38: #{tpu_custom_call.1} parent=5 // pred_check_branch
        %262 = sbr.rel (%p259) target = $region40
      $region39: #{tpu_custom_call.1} parent=5 // pred_region
        %s263 = ssub.s32 %s19, 1
        %s264 = sand.u32 %s46, 1
        %s265 = scalar_lea.sflag [#allocation5], %s264
        %s266 = sand.u32 %s46, 1
        %s267 = smul.addr %s266, 8
        %s268 = scalar_lea.vmem [#allocation4], %s267
        // Predicated region
        $region41: #{tpu_custom_call.1} parent=39 // pred_check
          %p269 = pneg %p59
        $region42: #{tpu_custom_call.1} parent=39 // pred_check_branch
          %271 = sbr.rel (%p269) target = $region44
        $region43: #{tpu_custom_call.1} parent=39 // pred_region
          %273 = dma.done %s265, 128
        $region44: #{tpu_custom_call.1} parent=39 // pred_fallthru
          _
        %s274 = sand.u32 %s24, 1
        %s275 = scalar_lea.sflag [#allocation8], %s274
        %s276 = sand.u32 %s72, 1
        %s277 = smul.addr %s276, 128
        %s278 = scalar_lea.vmem [#allocation7], %s277
        // Predicated region
        $region45: #{tpu_custom_call.1} parent=39 // pred_check
          %p279 = pneg %p85
        $region46: #{tpu_custom_call.1} parent=39 // pred_check_branch
          %281 = sbr.rel (%p279) target = $region48
        $region47: #{tpu_custom_call.1} parent=39 // pred_region
          %283 = dma.done %s275, 2048
        $region48: #{tpu_custom_call.1} parent=39 // pred_fallthru
          _
        // Predicated region
        $region49: #{tpu_custom_call.1} parent=39 // pred_check
          %p284 = pneg %p127
        $region50: #{tpu_custom_call.1} parent=39 // pred_check_branch
          %286 = sbr.rel (%p284) target = $region52
        $region51: #{tpu_custom_call.1} parent=39 // pred_region
          %288 = dma.done [#allocation8], 2048
        $region52: #{tpu_custom_call.1} parent=39 // pred_fallthru
          _
        %s289 = sand.u32 %s46, 1
        %s290 = scalar_lea.sflag [#allocation5], %s289
        %s291 = sand.u32 %s46, 1
        %s292 = smul.addr %s291, 8
        %s293 = scalar_lea.vmem [#allocation4], %s292
        %p294 = pneg %p59
        %p295 = pneg %p56
        %s296 = sand.u32 %s24, 1
        %s297 = scalar_lea.sflag [#allocation8], %s296
        %s298 = sand.u32 %s72, 1
        %s299 = smul.addr %s298, 128
        %s300 = scalar_lea.vmem [#allocation7], %s299
        %p301 = pneg %p85
        %p302 = pneg %p82
        %p303 = pneg %p106
        %p304 = pneg %p103
        %p305 = pneg %p127
        %p306 = pneg %p124
        %p307 = pneg %p148
        %p308 = pneg %p145
        %p309 = pneg %p174
        %p310 = pneg %p171
        %s311 = smul.u32 2, %s29
        %s312 = smul.u32 32, %s29
        %p313 = scmp.eq.s32.totalorder %s29, 0
        // Predicated region
        $region53: #{tpu_custom_call.1} parent=39 // pred_check
          %p314 = pneg %p313
        $region54: #{tpu_custom_call.1} parent=39 // pred_check_branch
          %316 = sbr.rel (%p314) target = $region56
        $region55: #{tpu_custom_call.1} parent=39 // pred_region
          %317 = vst [vmem:[#allocation2] sm:$0xff] 0.0
        $region56: #{tpu_custom_call.1} parent=39 // pred_fallthru
          _
        %v318 = vld [vmem:[#allocation2] sm:$0xff]
        %v319 = vld [vmem:[%s268] sm:$0xff]
        %v320 = vld [vmem:[%s278] sm:$0xf]
        %v321 = vld [vmem:[%s278 + $0x4] sm:$0xf]
        %v322 = vld [vmem:[%s278 + $0x8] sm:$0xf]
        %v323 = vld [vmem:[%s278 + $0xc] sm:$0xf]
        %v324 = vld [vmem:[%s278 + $0x10] sm:$0xf]
        %v325 = vld [vmem:[%s278 + $0x14] sm:$0xf]
        %v326 = vld [vmem:[%s278 + $0x18] sm:$0xf]
        %v327 = vld [vmem:[%s278 + $0x1c] sm:$0xf]
        %v328 = vld [vmem:[%s278 + $0x20] sm:$0xf]
        %v329 = vld [vmem:[%s278 + $0x24] sm:$0xf]
        %v330 = vld [vmem:[%s278 + $0x28] sm:$0xf]
        %v331 = vld [vmem:[%s278 + $0x2c] sm:$0xf]
        %v332 = vld [vmem:[%s278 + $0x30] sm:$0xf]
        %v333 = vld [vmem:[%s278 + $0x34] sm:$0xf]
        %v334 = vld [vmem:[%s278 + $0x38] sm:$0xf]
        %v335 = vld [vmem:[%s278 + $0x3c] sm:$0xf]
        %v336 = vld [vmem:[%s278 + $0x40] sm:$0xf]
        %v337 = vld [vmem:[%s278 + $0x44] sm:$0xf]
        %v338 = vld [vmem:[%s278 + $0x48] sm:$0xf]
        %v339 = vld [vmem:[%s278 + $0x4c] sm:$0xf]
        %v340 = vld [vmem:[%s278 + $0x50] sm:$0xf]
        %v341 = vld [vmem:[%s278 + $0x54] sm:$0xf]
        %v342 = vld [vmem:[%s278 + $0x58] sm:$0xf]
        %v343 = vld [vmem:[%s278 + $0x5c] sm:$0xf]
        %v344 = vld [vmem:[%s278 + $0x60] sm:$0xf]
        %v345 = vld [vmem:[%s278 + $0x64] sm:$0xf]
        %v346 = vld [vmem:[%s278 + $0x68] sm:$0xf]
        %v347 = vld [vmem:[%s278 + $0x6c] sm:$0xf]
        %v348 = vld [vmem:[%s278 + $0x70] sm:$0xf]
        %v349 = vld [vmem:[%s278 + $0x74] sm:$0xf]
        %v350 = vld [vmem:[%s278 + $0x78] sm:$0xf]
        %v351 = vld [vmem:[%s278 + $0x7c] sm:$0xf]
        %v353 = vunpack.c.l.b16 %v319
        %v354 = vunpack.c.h.b16 %v319
        %v355 = vpack.c.b16 %v353, %v353
        %v356 = vpack.c.b16 %v354, %v354
        %v391 = vunpack.c.l.b16 %v320
        %v392 = vunpack.c.l.b16 %v321
        %v393 = vunpack.c.l.b16 %v322
        %v394 = vunpack.c.l.b16 %v323
        %v395 = vunpack.c.l.b16 %v324
        %v396 = vunpack.c.l.b16 %v325
        %v397 = vunpack.c.l.b16 %v326
        %v398 = vunpack.c.l.b16 %v327
        %v399 = vunpack.c.l.b16 %v328
        %v400 = vunpack.c.l.b16 %v329
        %v401 = vunpack.c.l.b16 %v330
        %v402 = vunpack.c.l.b16 %v331
        %v403 = vunpack.c.l.b16 %v332
        %v404 = vunpack.c.l.b16 %v333
        %v405 = vunpack.c.l.b16 %v334
        %v406 = vunpack.c.l.b16 %v335
        %v407 = vunpack.c.l.b16 %v336
        %v408 = vunpack.c.l.b16 %v337
        %v409 = vunpack.c.l.b16 %v338
        %v410 = vunpack.c.l.b16 %v339
        %v411 = vunpack.c.l.b16 %v340
        %v412 = vunpack.c.l.b16 %v341
        %v413 = vunpack.c.l.b16 %v342
        %v414 = vunpack.c.l.b16 %v343
        %v415 = vunpack.c.l.b16 %v344
        %v416 = vunpack.c.l.b16 %v345
        %v417 = vunpack.c.l.b16 %v346
        %v418 = vunpack.c.l.b16 %v347
        %v419 = vunpack.c.l.b16 %v348
        %v420 = vunpack.c.l.b16 %v349
        %v421 = vunpack.c.l.b16 %v350
        %v422 = vunpack.c.l.b16 %v351
        %v423 = vpack.c.b16 %v392, %v391
        %v424 = vpack.c.b16 %v394, %v393
        %v425 = vpack.c.b16 %v396, %v395
        %v426 = vpack.c.b16 %v398, %v397
        %v427 = vpack.c.b16 %v400, %v399
        %v428 = vpack.c.b16 %v402, %v401
        %v429 = vpack.c.b16 %v404, %v403
        %v430 = vpack.c.b16 %v406, %v405
        %v431 = vpack.c.b16 %v408, %v407
        %v432 = vpack.c.b16 %v410, %v409
        %v433 = vpack.c.b16 %v412, %v411
        %v434 = vpack.c.b16 %v414, %v413
        %v435 = vpack.c.b16 %v416, %v415
        %v436 = vpack.c.b16 %v418, %v417
        %v437 = vpack.c.b16 %v420, %v419
        %v438 = vpack.c.b16 %v422, %v421
        %455 = vmatpush.bf16.msra.mxu0 %v430
        %456 = vmatpush.bf16.msra.mxu0 %v429
        %457 = vmatpush.bf16.msra.mxu0 %v428
        %458 = vmatpush.bf16.msra.mxu0 %v427
        %459 = vmatpush.bf16.msra.mxu0 %v426
        %460 = vmatpush.bf16.msra.mxu0 %v425
        %461 = vmatpush.bf16.msra.mxu0 %v424
        %462 = vmatpush.bf16.msra.mxu0 %v423
        %463 = vmatmul.bf16.gmra.mxu0 %v355
        %v464 = vpop.f32.mrf.mxu0
        %v465 = vadd.f32 0.0, %v464
        %v466 = vpop.f32.mrf.mxu0
        %467 = vdwg.mxu0
        %468 = vmatpush.bf16.msra.mxu0 %v438
        %469 = vmatpush.bf16.msra.mxu0 %v437
        %470 = vmatpush.bf16.msra.mxu0 %v436
        %471 = vmatpush.bf16.msra.mxu0 %v435
        %472 = vmatpush.bf16.msra.mxu0 %v434
        %473 = vmatpush.bf16.msra.mxu0 %v433
        %474 = vmatpush.bf16.msra.mxu0 %v432
        %475 = vmatpush.bf16.msra.mxu0 %v431
        %476 = vmatmul.bf16.gmra.mxu0 %v356
        %v477 = vpop.f32.mrf.mxu0
        %v478 = vadd.f32 %v465, %v477
        %v479 = vpop.f32.mrf.mxu0
        %480 = vdwg.mxu0
        %v481 = vadd.f32 %v318, %v478
        %482 = vst [vmem:[#allocation2] sm:$0xff] %v481
        %p483 = scmp.eq.s32.totalorder %s29, 2
        // Predicated region
        $region57: #{tpu_custom_call.1} parent=39 // pred_check
          %p484 = pneg %p483
        $region58: #{tpu_custom_call.1} parent=39 // pred_check_branch
          %486 = sbr.rel (%p484) target = $region60
        $region59: #{tpu_custom_call.1} parent=39 // pred_region
          %v487 = vld [vmem:[#allocation2] sm:$0xff]
          %v488 = vmul.f32 %v487, %v487
          %489 = vadd.xlane.f32.xlu0 %v488
          %v490 = vpop.xlane.xlu0 %489
          %v491 = vadd.f32 %v490, 1e-12
          %v492 = vrsqrt.pop %v491
          %v493 = vmul.f32 %v492, %v491
          %v494 = vmul.f32 %v493, %v492
          %v495 = vmul.f32 0.5, %v494
          %v496 = vsub.f32 1.5, %v495
          %v497 = vmul.f32 %v492, %v496
          %vm498 = vweird.f32 %v491
          %vm499 = vweird.f32 %v492
          %vm500 = vmor %vm498, %vm499
          %v501 = vsel %vm500, %v492, %v497
          %v502 = vmul.f32 %v487, %v501
          %v503 = vld [vmem:[%s2] sm:$0x1]
          %v505 = vperm.slane %v503, 0
          %v507 = vmul.f32 %v502, %v505
          %508 = vadd.xlane.f32.xlu0 %v507
          %v509 = vpop.xlane.xlu0 %508
          %v510 = vmul.f32 %v509, %v509
          %v511 = vsub.f32 1.0, %v510
          %v512 = vmax.f32 %v511, 0.0
          %v513 = vadd.f32 %v512, 1e-12
          %v514 = vrsqrt.pop %v513
          %v515 = vmul.f32 %v514, %v513
          %v516 = vmul.f32 %v515, %v514
          %v517 = vmul.f32 0.5, %v516
          %v518 = vsub.f32 1.5, %v517
          %v519 = vmul.f32 %v514, %v518
          %vm520 = vweird.f32 %v513
          %vm521 = vweird.f32 %v514
          %vm522 = vmor %vm520, %vm521
          %v523 = vsel %vm522, %v514, %v519
          %v524 = vmul.f32 %v509, %v502
          %v525 = vsub.f32 %v505, %v524
          %v526 = vsub.f32 0.0, %v525
          %v527 = vmul.f32 %v526, %v523
          %v528 = vmul.f32 %v527, 0.1
          %v529 = vsub.f32 0.0, %v528
          %v530 = vmul.f32 %v529, 30.0
          %v531 = vadd.f32 %v502, %v530
          %v532 = vmul.f32 %v531, %v531
          %533 = vadd.xlane.f32.xlu0 %v532
          %v534 = vpop.xlane.xlu0 %533
          %v535 = vadd.f32 %v534, 1e-12
          %v536 = vrsqrt.pop %v535
          %v537 = vmul.f32 %v536, %v535
          %v538 = vmul.f32 %v537, %v536
          %v539 = vmul.f32 0.5, %v538
          %v540 = vsub.f32 1.5, %v539
          %v541 = vmul.f32 %v536, %v540
          %vm542 = vweird.f32 %v535
          %vm543 = vweird.f32 %v536
          %vm544 = vmor %vm542, %vm543
          %v545 = vsel %vm544, %v536, %v541
          %v546 = vmul.f32 %v531, %v545
          %v547 = vmul.f32 %v546, %v505
          %548 = vadd.xlane.f32.xlu0 %v547
          %v549 = vpop.xlane.xlu0 %548
          %v550 = vmul.f32 %v549, %v549
          %v551 = vsub.f32 1.0, %v550
          %v552 = vmax.f32 %v551, 0.0
          %v553 = vadd.f32 %v552, 1e-12
          %v554 = vrsqrt.pop %v553
          %v555 = vmul.f32 %v554, %v553
          %v556 = vmul.f32 %v555, %v554
          %v557 = vmul.f32 0.5, %v556
          %v558 = vsub.f32 1.5, %v557
          %v559 = vmul.f32 %v554, %v558
          %vm560 = vweird.f32 %v553
          %vm561 = vweird.f32 %v554
          %vm562 = vmor %vm560, %vm561
          %v563 = vsel %vm562, %v554, %v559
          %v564 = vmul.f32 %v549, %v546
          %v565 = vsub.f32 %v505, %v564
          %v566 = vsub.f32 0.0, %v565
          %v567 = vmul.f32 %v566, %v563
          %v568 = vmul.f32 %v529, 0.9
          %v569 = vmul.f32 %v567, 0.1
          %v570 = vsub.f32 %v568, %v569
          %v571 = vmul.f32 %v570, 30.0
          %v572 = vadd.f32 %v546, %v571
          %v573 = vmul.f32 %v572, %v572
          %574 = vadd.xlane.f32.xlu0 %v573
          %v575 = vpop.xlane.xlu0 %574
          %v576 = vadd.f32 %v575, 1e-12
          %v577 = vrsqrt.pop %v576
          %v578 = vmul.f32 %v577, %v576
          %v579 = vmul.f32 %v578, %v577
          %v580 = vmul.f32 0.5, %v579
          %v581 = vsub.f32 1.5, %v580
          %v582 = vmul.f32 %v577, %v581
          %vm583 = vweird.f32 %v576
          %vm584 = vweird.f32 %v577
          %vm585 = vmor %vm583, %vm584
          %v586 = vsel %vm585, %v577, %v582
          %v587 = vmul.f32 %v572, %v586
          %v588 = vmul.f32 %v587, %v505
          %589 = vadd.xlane.f32.xlu0 %v588
          %v590 = vpop.xlane.xlu0 %589
          %v591 = vmul.f32 %v590, %v590
          %v592 = vsub.f32 1.0, %v591
          %v593 = vmax.f32 %v592, 0.0
          %v594 = vadd.f32 %v593, 1e-12
          %v595 = vrsqrt.pop %v594
          %v596 = vmul.f32 %v595, %v594
          %v597 = vmul.f32 %v596, %v595
          %v598 = vmul.f32 0.5, %v597
          %v599 = vsub.f32 1.5, %v598
          %v600 = vmul.f32 %v595, %v599
          %vm601 = vweird.f32 %v594
          %vm602 = vweird.f32 %v595
          %vm603 = vmor %vm601, %vm602
          %v604 = vsel %vm603, %v595, %v600
          %v605 = vmul.f32 %v590, %v587
          %v606 = vsub.f32 %v505, %v605
          %v607 = vsub.f32 0.0, %v606
          %v608 = vmul.f32 %v607, %v604
          %v609 = vmul.f32 %v570, 0.9
          %v610 = vmul.f32 %v608, 0.1
          %v611 = vsub.f32 %v609, %v610
          %v612 = vmul.f32 %v611, 30.0
          %v613 = vadd.f32 %v587, %v612
          %v614 = vmul.f32 %v613, %v613
          %615 = vadd.xlane.f32.xlu0 %v614
          %v616 = vpop.xlane.xlu0 %615
          %v617 = vadd.f32 %v616, 1e-12
          %v618 = vrsqrt.pop %v617
          %v619 = vmul.f32 %v618, %v617
          %v620 = vmul.f32 %v619, %v618
          %v621 = vmul.f32 0.5, %v620
          %v622 = vsub.f32 1.5, %v621
          %v623 = vmul.f32 %v618, %v622
          %vm624 = vweird.f32 %v617
          %vm625 = vweird.f32 %v618
          %vm626 = vmor %vm624, %vm625
          %v627 = vsel %vm626, %v618, %v623
          %v628 = vmul.f32 %v613, %v627
          %v629 = vmul.f32 %v628, %v505
          %630 = vadd.xlane.f32.xlu0 %v629
          %v631 = vpop.xlane.xlu0 %630
          %v632 = vmul.f32 %v631, %v631
          %v633 = vsub.f32 1.0, %v632
          %v634 = vmax.f32 %v633, 0.0
          %v635 = vadd.f32 %v634, 1e-12
          %v636 = vrsqrt.pop %v635
          %v637 = vmul.f32 %v636, %v635
          %v638 = vmul.f32 %v637, %v636
          %v639 = vmul.f32 0.5, %v638
          %v640 = vsub.f32 1.5, %v639
          %v641 = vmul.f32 %v636, %v640
          %vm642 = vweird.f32 %v635
          %vm643 = vweird.f32 %v636
          %vm644 = vmor %vm642, %vm643
          %v645 = vsel %vm644, %v636, %v641
          %v646 = vmul.f32 %v631, %v628
          %v647 = vsub.f32 %v505, %v646
          %v648 = vsub.f32 0.0, %v647
          %v649 = vmul.f32 %v648, %v645
          %v650 = vmul.f32 %v611, 0.9
          %v651 = vmul.f32 %v649, 0.1
          %v652 = vsub.f32 %v650, %v651
          %v653 = vmul.f32 %v652, 30.0
          %v654 = vadd.f32 %v628, %v653
          %v655 = vmul.f32 %v654, %v654
          %656 = vadd.xlane.f32.xlu0 %v655
          %v657 = vpop.xlane.xlu0 %656
          %v658 = vadd.f32 %v657, 1e-12
          %v659 = vrsqrt.pop %v658
          %v660 = vmul.f32 %v659, %v658
          %v661 = vmul.f32 %v660, %v659
          %v662 = vmul.f32 0.5, %v661
          %v663 = vsub.f32 1.5, %v662
          %v664 = vmul.f32 %v659, %v663
          %vm665 = vweird.f32 %v658
          %vm666 = vweird.f32 %v659
          %vm667 = vmor %vm665, %vm666
          %v668 = vsel %vm667, %v659, %v664
          %v669 = vmul.f32 %v654, %v668
          %v670 = vmul.f32 %v669, %v505
          %671 = vadd.xlane.f32.xlu0 %v670
          %v672 = vpop.xlane.xlu0 %671
          %v673 = vmul.f32 %v672, %v672
          %v674 = vsub.f32 1.0, %v673
          %v675 = vmax.f32 %v674, 0.0
          %v676 = vadd.f32 %v675, 1e-12
          %v677 = vrsqrt.pop %v676
          %v678 = vmul.f32 %v677, %v676
          %v679 = vmul.f32 %v678, %v677
          %v680 = vmul.f32 0.5, %v679
          %v681 = vsub.f32 1.5, %v680
          %v682 = vmul.f32 %v677, %v681
          %vm683 = vweird.f32 %v676
          %vm684 = vweird.f32 %v677
          %vm685 = vmor %vm683, %vm684
          %v686 = vsel %vm685, %v677, %v682
          %v687 = vmul.f32 %v672, %v669
          %v688 = vsub.f32 %v505, %v687
          %v689 = vsub.f32 0.0, %v688
          %v690 = vmul.f32 %v689, %v686
          %v691 = vmul.f32 %v652, 0.9
          %v692 = vmul.f32 %v690, 0.1
          %v693 = vsub.f32 %v691, %v692
          %v694 = vmul.f32 %v693, 30.0
          %v695 = vadd.f32 %v669, %v694
          %v696 = vmul.f32 %v695, %v695
          %697 = vadd.xlane.f32.xlu0 %v696
          %v698 = vpop.xlane.xlu0 %697
          %v699 = vadd.f32 %v698, 1e-12
          %v700 = vrsqrt.pop %v699
          %v701 = vmul.f32 %v700, %v699
          %v702 = vmul.f32 %v701, %v700
          %v703 = vmul.f32 0.5, %v702
          %v704 = vsub.f32 1.5, %v703
          %v705 = vmul.f32 %v700, %v704
          %vm706 = vweird.f32 %v699
          %vm707 = vweird.f32 %v700
          %vm708 = vmor %vm706, %vm707
          %v709 = vsel %vm708, %v700, %v705
          %v710 = vmul.f32 %v695, %v709
          %v711 = vmul.f32 %v710, %v505
          %712 = vadd.xlane.f32.xlu0 %v711
          %v713 = vpop.xlane.xlu0 %712
          %v714 = vmul.f32 %v713, %v713
          %v715 = vsub.f32 1.0, %v714
          %v716 = vmax.f32 %v715, 0.0
          %v717 = vadd.f32 %v716, 1e-12
          %v718 = vrsqrt.pop %v717
          %v719 = vmul.f32 %v718, %v717
          %v720 = vmul.f32 %v719, %v718
          %v721 = vmul.f32 0.5, %v720
          %v722 = vsub.f32 1.5, %v721
          %v723 = vmul.f32 %v718, %v722
          %vm724 = vweird.f32 %v717
          %vm725 = vweird.f32 %v718
          %vm726 = vmor %vm724, %vm725
          %v727 = vsel %vm726, %v718, %v723
          %v728 = vmul.f32 %v713, %v710
          %v729 = vsub.f32 %v505, %v728
          %v730 = vsub.f32 0.0, %v729
          %v731 = vmul.f32 %v730, %v727
          %v732 = vmul.f32 %v693, 0.9
          %v733 = vmul.f32 %v731, 0.1
          %v734 = vsub.f32 %v732, %v733
          %v735 = vmul.f32 %v734, 30.0
          %v736 = vadd.f32 %v710, %v735
          %v737 = vmul.f32 %v736, %v736
          %738 = vadd.xlane.f32.xlu0 %v737
          %v739 = vpop.xlane.xlu0 %738
          %v740 = vadd.f32 %v739, 1e-12
          %v741 = vrsqrt.pop %v740
          %v742 = vmul.f32 %v741, %v740
          %v743 = vmul.f32 %v742, %v741
          %v744 = vmul.f32 0.5, %v743
          %v745 = vsub.f32 1.5, %v744
          %v746 = vmul.f32 %v741, %v745
          %vm747 = vweird.f32 %v740
          %vm748 = vweird.f32 %v741
          %vm749 = vmor %vm747, %vm748
          %v750 = vsel %vm749, %v741, %v746
          %v751 = vmul.f32 %v736, %v750
          %v752 = vmul.f32 %v751, %v505
          %753 = vadd.xlane.f32.xlu0 %v752
          %v754 = vpop.xlane.xlu0 %753
          %v755 = vmul.f32 %v754, %v754
          %v756 = vsub.f32 1.0, %v755
          %v757 = vmax.f32 %v756, 0.0
          %v758 = vadd.f32 %v757, 1e-12
          %v759 = vrsqrt.pop %v758
          %v760 = vmul.f32 %v759, %v758
          %v761 = vmul.f32 %v760, %v759
          %v762 = vmul.f32 0.5, %v761
          %v763 = vsub.f32 1.5, %v762
          %v764 = vmul.f32 %v759, %v763
          %vm765 = vweird.f32 %v758
          %vm766 = vweird.f32 %v759
          %vm767 = vmor %vm765, %vm766
          %v768 = vsel %vm767, %v759, %v764
          %v769 = vmul.f32 %v754, %v751
          %v770 = vsub.f32 %v505, %v769
          %v771 = vsub.f32 0.0, %v770
          %v772 = vmul.f32 %v771, %v768
          %v773 = vmul.f32 %v734, 0.9
          %v774 = vmul.f32 %v772, 0.1
          %v775 = vsub.f32 %v773, %v774
          %v776 = vmul.f32 %v775, 30.0
          %v777 = vadd.f32 %v751, %v776
          %v778 = vmul.f32 %v777, %v777
          %779 = vadd.xlane.f32.xlu0 %v778
          %v780 = vpop.xlane.xlu0 %779
          %v781 = vadd.f32 %v780, 1e-12
          %v782 = vrsqrt.pop %v781
          %v783 = vmul.f32 %v782, %v781
          %v784 = vmul.f32 %v783, %v782
          %v785 = vmul.f32 0.5, %v784
          %v786 = vsub.f32 1.5, %v785
          %v787 = vmul.f32 %v782, %v786
          %vm788 = vweird.f32 %v781
          %vm789 = vweird.f32 %v782
          %vm790 = vmor %vm788, %vm789
          %v791 = vsel %vm790, %v782, %v787
          %v792 = vmul.f32 %v777, %v791
          %v793 = vmul.f32 %v792, %v505
          %794 = vadd.xlane.f32.xlu0 %v793
          %v795 = vpop.xlane.xlu0 %794
          %v796 = vmul.f32 %v795, %v795
          %v797 = vsub.f32 1.0, %v796
          %v798 = vmax.f32 %v797, 0.0
          %v799 = vadd.f32 %v798, 1e-12
          %v800 = vrsqrt.pop %v799
          %v801 = vmul.f32 %v800, %v799
          %v802 = vmul.f32 %v801, %v800
          %v803 = vmul.f32 0.5, %v802
          %v804 = vsub.f32 1.5, %v803
          %v805 = vmul.f32 %v800, %v804
          %vm806 = vweird.f32 %v799
          %vm807 = vweird.f32 %v800
          %vm808 = vmor %vm806, %vm807
          %v809 = vsel %vm808, %v800, %v805
          %v810 = vmul.f32 %v795, %v792
          %v811 = vsub.f32 %v505, %v810
          %v812 = vsub.f32 0.0, %v811
          %v813 = vmul.f32 %v812, %v809
          %v814 = vmul.f32 %v775, 0.9
          %v815 = vmul.f32 %v813, 0.1
          %v816 = vsub.f32 %v814, %v815
          %v817 = vmul.f32 %v816, 30.0
          %v818 = vadd.f32 %v792, %v817
          %v819 = vmul.f32 %v818, %v818
          %820 = vadd.xlane.f32.xlu0 %v819
          %v821 = vpop.xlane.xlu0 %820
          %v822 = vadd.f32 %v821, 1e-12
          %v823 = vrsqrt.pop %v822
          %v824 = vmul.f32 %v823, %v822
          %v825 = vmul.f32 %v824, %v823
          %v826 = vmul.f32 0.5, %v825
          %v827 = vsub.f32 1.5, %v826
          %v828 = vmul.f32 %v823, %v827
          %vm829 = vweird.f32 %v822
          %vm830 = vweird.f32 %v823
          %vm831 = vmor %vm829, %vm830
          %v832 = vsel %vm831, %v823, %v828
          %v833 = vmul.f32 %v818, %v832
          %v834 = vmul.f32 %v833, %v505
          %835 = vadd.xlane.f32.xlu0 %v834
          %v836 = vpop.xlane.xlu0 %835
          %v837 = vmul.f32 %v836, %v836
          %v838 = vsub.f32 1.0, %v837
          %v839 = vmax.f32 %v838, 0.0
          %v840 = vadd.f32 %v839, 1e-12
          %v841 = vrsqrt.pop %v840
          %v842 = vmul.f32 %v841, %v840
          %v843 = vmul.f32 %v842, %v841
          %v844 = vmul.f32 0.5, %v843
          %v845 = vsub.f32 1.5, %v844
          %v846 = vmul.f32 %v841, %v845
          %vm847 = vweird.f32 %v840
          %vm848 = vweird.f32 %v841
          %vm849 = vmor %vm847, %vm848
          %v850 = vsel %vm849, %v841, %v846
          %v851 = vmul.f32 %v836, %v833
          %v852 = vsub.f32 %v505, %v851
          %v853 = vsub.f32 0.0, %v852
          %v854 = vmul.f32 %v853, %v850
          %v855 = vmul.f32 %v816, 0.9
          %v856 = vmul.f32 %v854, 0.1
          %v857 = vsub.f32 %v855, %v856
          %v858 = vmul.f32 %v857, 30.0
          %v859 = vadd.f32 %v833, %v858
          %v860 = vmul.f32 %v859, %v859
          %861 = vadd.xlane.f32.xlu0 %v860
          %v862 = vpop.xlane.xlu0 %861
          %v863 = vadd.f32 %v862, 1e-12
          %v864 = vrsqrt.pop %v863
          %v865 = vmul.f32 %v864, %v863
          %v866 = vmul.f32 %v865, %v864
          %v867 = vmul.f32 0.5, %v866
          %v868 = vsub.f32 1.5, %v867
          %v869 = vmul.f32 %v864, %v868
          %vm870 = vweird.f32 %v863
          %vm871 = vweird.f32 %v864
          %vm872 = vmor %vm870, %vm871
          %v873 = vsel %vm872, %v864, %v869
          %v874 = vmul.f32 %v859, %v873
          %v875 = vmul.f32 %v874, %v505
          %876 = vadd.xlane.f32.xlu0 %v875
          %v877 = vpop.xlane.xlu0 %876
          %v878 = vmul.f32 %v877, %v877
          %v879 = vsub.f32 1.0, %v878
          %v880 = vmax.f32 %v879, 0.0
          %v881 = vadd.f32 %v880, 1e-12
          %v882 = vrsqrt.pop %v881
          %v883 = vmul.f32 %v882, %v881
          %v884 = vmul.f32 %v883, %v882
          %v885 = vmul.f32 0.5, %v884
          %v886 = vsub.f32 1.5, %v885
          %v887 = vmul.f32 %v882, %v886
          %vm888 = vweird.f32 %v881
          %vm889 = vweird.f32 %v882
          %vm890 = vmor %vm888, %vm889
          %v891 = vsel %vm890, %v882, %v887
          %v892 = vmul.f32 %v877, %v874
          %v893 = vsub.f32 %v505, %v892
          %v894 = vsub.f32 0.0, %v893
          %v895 = vmul.f32 %v894, %v891
          %v896 = vmul.f32 %v857, 0.9
          %v897 = vmul.f32 %v895, 0.1
          %v898 = vsub.f32 %v896, %v897
          %v899 = vmul.f32 %v898, 30.0
          %v900 = vadd.f32 %v874, %v899
          %v901 = vmul.f32 %v900, %v900
          %902 = vadd.xlane.f32.xlu0 %v901
          %v903 = vpop.xlane.xlu0 %902
          %v904 = vadd.f32 %v903, 1e-12
          %v905 = vrsqrt.pop %v904
          %v906 = vmul.f32 %v905, %v904
          %v907 = vmul.f32 %v906, %v905
          %v908 = vmul.f32 0.5, %v907
          %v909 = vsub.f32 1.5, %v908
          %v910 = vmul.f32 %v905, %v909
          %vm911 = vweird.f32 %v904
          %vm912 = vweird.f32 %v905
          %vm913 = vmor %vm911, %vm912
          %v914 = vsel %vm913, %v905, %v910
          %v915 = vmul.f32 %v900, %v914
          %v916 = vld [vmem:[#allocation9] sm:$0xff]
          %v917 = vld [vmem:[#allocation9 + $0x8] sm:$0xff]
          %v918 = vld [vmem:[#allocation9 + $0x10] sm:$0xff]
          %v919 = vld [vmem:[#allocation9 + $0x18] sm:$0xff]
          %v920 = vld [vmem:[#allocation9 + $0x20] sm:$0xff]
          %v921 = vld [vmem:[#allocation9 + $0x28] sm:$0xff]
          %v922 = vld [vmem:[#allocation9 + $0x30] sm:$0xff]
          %v923 = vld [vmem:[#allocation9 + $0x38] sm:$0xff]
          %v924 = vld [vmem:[#allocation9 + $0x40] sm:$0xff]
          %v925 = vld [vmem:[#allocation9 + $0x48] sm:$0xff]
          %v926 = vld [vmem:[#allocation9 + $0x50] sm:$0xff]
          %v927 = vld [vmem:[#allocation9 + $0x58] sm:$0xff]
          %v928 = vld [vmem:[#allocation9 + $0x60] sm:$0xff]
          %v929 = vld [vmem:[#allocation9 + $0x68] sm:$0xff]
          %v930 = vld [vmem:[#allocation9 + $0x70] sm:$0xff]
          %v931 = vld [vmem:[#allocation9 + $0x78] sm:$0xff]
          %932 = vmatpush.msra.mxu0 %v931
          %933 = vmatpush.msra.mxu0 %v930
          %934 = vmatpush.msra.mxu0 %v929
          %935 = vmatpush.msra.mxu0 %v928
          %936 = vmatpush.msra.mxu0 %v927
          %937 = vmatpush.msra.mxu0 %v926
          %938 = vmatpush.msra.mxu0 %v925
          %939 = vmatpush.msra.mxu0 %v924
          %940 = vmatpush.msra.mxu0 %v923
          %941 = vmatpush.msra.mxu0 %v922
          %942 = vmatpush.msra.mxu0 %v921
          %943 = vmatpush.msra.mxu0 %v920
          %944 = vmatpush.msra.mxu0 %v919
          %945 = vmatpush.msra.mxu0 %v918
          %946 = vmatpush.msra.mxu0 %v917
          %947 = vmatpush.msra.mxu0 %v916
          %948 = vmatmul.f32.gmra.mxu0 %v915
          %v949 = vpop.f32.mrf.mxu0
          %v950 = vadd.f32 0.0, %v949
          %951 = vdwg.mxu0
          %s952 = sld [smem:[#allocation3]]
          %v953 = vstv %s952
          %v954 = vmul.f32 %v950, %v953
          %955 = vst [vmem:[#allocation10] sm:$0xff] %v954
        $region60: #{tpu_custom_call.1} parent=39 // pred_fallthru
          _
        // Predicated region
        $region61: #{tpu_custom_call.1} parent=39 // pred_check
          %p956 = pneg %p171
        $region62: #{tpu_custom_call.1} parent=39 // pred_check_branch
          %958 = sbr.rel (%p956) target = $region64
        $region63: #{tpu_custom_call.1} parent=39 // pred_region
          %960 = vsyncadd [#allocation6], 0
          %s961 = smul.addr %s28, 8
          %s962 = scalar_lea.hbm %s5, %s961
          %s964 = sshll.u32 [#allocation10], 4
          %s965 = int_to_ptr.vmem [resolvable:$true] %s964
          %s966 = sshll.u32 %s962, 4
          %s967 = int_to_ptr.hbm [resolvable:$true] %s966
          %969 = dma.vmem_to_hbm [thread:$0]  %s965, 128, %s967, [#allocation6]
        $region64: #{tpu_custom_call.1} parent=39 // pred_fallthru
          _
        // Predicated region
        $region65: #{tpu_custom_call.1} parent=39 // pred_check
          %p970 = pneg %p171
        $region66: #{tpu_custom_call.1} parent=39 // pred_check_branch
          %972 = sbr.rel (%p970) target = $region68
        $region67: #{tpu_custom_call.1} parent=39 // pred_region
          %974 = dma.done [#allocation6], 128
        $region68: #{tpu_custom_call.1} parent=39 // pred_fallthru
          _
      $region40: #{tpu_custom_call.1} parent=5 // pred_fallthru
        _
      %p975 = scmp.le.s32.totalorder 2, %s19
      // Predicated region
      $region69: #{tpu_custom_call.1} parent=5 // pred_check
        %p976 = pneg %p975
      $region70: #{tpu_custom_call.1} parent=5 // pred_check_branch
        %978 = sbr.rel (%p976) target = $region72
      $region71: #{tpu_custom_call.1} parent=5 // pred_region
        %s979 = ssub.s32 %s19, 2
      $region72: #{tpu_custom_call.1} parent=5 // pred_fallthru
        _
    $region6: #{tpu_custom_call.1} parent=1 // loop_footer
      %s23 = sadd.s32 1, %s19
    $region7: #{tpu_custom_call.1} parent=1 // loop_footer_branch
      %18 = sbr.rel target = $region3
    $region8: #{tpu_custom_call.1} parent=1 // loop_exit
      _
    %980 = vsyncpa [#allocation5], 1
    %s981 = scalar_lea.sflag [#allocation5], 1
    %982 = vsyncpa %s981, 1
    %983 = vsyncpa [#allocation8], 1
    %s984 = scalar_lea.sflag [#allocation8], 1
    %985 = vsyncpa %s984, 1
    %986 = vsyncpa [#allocation6], 1
    %s987 = scalar_lea.sflag [#allocation6], 1
    %988 = vsyncpa %s987, 1

</llo_original>
